<compile_context>
chip_gen: v5e
topology: v5e:2x2
jax: 0.10.0
libtpu: 0.0.40
codegen_flags: <defaults>
</compile_context>

<pallas_src>
import functools

import jax
import jax.numpy as jnp
from jax import lax
from jax.experimental import pallas as pl
from jax.experimental.pallas import tpu as pltpu

BN_EPS = 1e-5


def _round_up(a, b):
    return (a + b - 1) // b * b


# ---------------------------------------------------------------------------
# Kernel A: BN batch statistics of m = MFM(conv1x1(x)).
# x block: (1, cin, TL) bf16, channels on sublanes, padded flat pixels on lanes.
# No mask: padded positions contribute an exact per-channel constant that the
# wrapper subtracts.  Accumulates per-image sum / sum-of-squares over lane tiles.
# ---------------------------------------------------------------------------
def _stats_kernel(x_ref, w1c_ref, b1c_ref, s1_ref, s2_ref):
    @pl.when(pl.program_id(1) == 0)
    def _init():
        s1_ref[...] = jnp.zeros_like(s1_ref)
        s2_ref[...] = jnp.zeros_like(s2_ref)

    cin = x_ref.shape[1]
    x = x_ref[0]                                                   # (cin, TL) bf16
    # fused-MFM conv1x1: one matmul, max over the two sublane halves
    y = jnp.dot(w1c_ref[...], x, preferred_element_type=jnp.float32) + b1c_ref[...]
    m = jnp.maximum(y[:cin], y[cin:])                              # (cin, TL) f32
    s1_ref[...] += jnp.sum(m, axis=1, keepdims=True)[None]
    s2_ref[...] += jnp.sum(m * m, axis=1, keepdims=True)[None]


# ---------------------------------------------------------------------------
# Kernel B: fused 1x1-conv + MFM + BN-apply + kxk conv (in-VMEM im2col) + MFM.
# Per-image grid step.  The kxk conv is ONE stacked-tap matmul:
#   zs[(kh*k+kw)*cin : +cin, :] = z[:, kh*wp+kw : +q_pad]   (k*k shifted views)
#   out = max over halves of (w2c @ zs + b2c)
# ---------------------------------------------------------------------------
def _fused_group_kernel(ksz, wp, stride,
                        x_ref, mask_ref, w1c_ref, b1c_ref, scale_ref, shift_ref,
                        w2c_ref, b2c_ref, o_ref, z_ref, zs_ref):
    cin = x_ref.shape[1]
    cout = o_ref.shape[1]
    q_pad = o_ref.shape[2]

    x = x_ref[0]                                                   # (cin, Lp) bf16
    y = jnp.dot(w1c_ref[...], x, preferred_element_type=jnp.float32) + b1c_ref[...]
    m = jnp.maximum(y[:cin], y[cin:])                              # (cin, Lp) f32
    # BN apply (scale/shift from pass-1 stats); zero the conv zero-padding positions
    # so the kxk conv sees the same zero pad as the reference (pad happens after BN).
    z = (scale_ref[...] * m + shift_ref[...]) * mask_ref[...]
    z_ref[...] = z.astype(z_ref.dtype)                             # bf16, VMEM resident

    # Stack the k*k shifted taps into an in-VMEM im2col buffer (paid once per image).
    for kh in range(ksz):
        for kw in range(ksz):
            t = kh * ksz + kw
            off = kh * wp + kw                                     # static flat shift
            if stride == 1:
                tap = z_ref[:, pl.ds(off, q_pad)]
            else:
                # TODO(synk): stride>1 uses lane-strided reads; compact instead.
                tap = z_ref[:, pl.ds(off, q_pad, stride)]
            zs_ref[pl.ds(t * cin, cin), :] = tap

    # Single MXU matmul with contraction depth k*k*cin, then MFM over sublane halves.
    y2 = jnp.dot(w2c_ref[...], zs_ref[...],
                 preferred_element_type=jnp.float32) + b2c_ref[...]
    o_ref[0] = jnp.maximum(y2[:cout], y2[cout:]).astype(o_ref.dtype)


# ---------------------------------------------------------------------------
# Wrapper: layout prep (pad + flatten, stays NCHW), two Pallas passes, final
# column slice (no transpose).
# ---------------------------------------------------------------------------
@functools.partial(jax.jit, static_argnames=("stride", "padding"))
def group_forward(x, w1, b1, gamma, beta, w2, b2, *, stride=1, padding=1):
    """x: (N, Cin, H, W) f32 NCHW (PyTorch layout). Returns (N, Cout, Hout, Wout) f32."""
    N, cin, H, W = x.shape
    two_cout, _, ksz, _ = w2.shape
    cout = two_cout // 2

    hp, wp = H + 2 * padding, W + 2 * padding
    hout = (H + 2 * padding - ksz) // stride + 1
    wout = (W + 2 * padding - ksz) // stride + 1

    q = hout * wp                              # flat output columns (incl. W-pad garbage)
    q_pad = _round_up(q, 128)                  # lane-dense (unmasked) output stores
    max_off = (ksz - 1) * wp + (ksz - 1)
    l_need = max_off + stride * (q_pad - 1) + 1
    l_pad = _round_up(max(l_need, hp * wp), 128)

    # Stats-pass tile: whole flat dim per image when it fits a ~1 MiB bf16 block.
    tl_target = max(8 * 128, _round_up((1 << 20) // max(1, 2 * cin), 128))
    if l_pad <= tl_target:
        tl = l_pad
    else:
        tl = tl_target
        l_pad = _round_up(l_pad, tl)
    n_lt = l_pad // tl

    # Pad spatially, flatten (H, W) onto lanes, pad flat dim, cast matmul operand to bf16.
    xp = jnp.pad(x, ((0, 0), (0, 0), (padding, padding), (padding, padding)))
    xpf = xp.reshape(N, cin, hp * wp)
    xpf = jnp.pad(xpf, ((0, 0), (0, 0), (0, l_pad - hp * wp))).astype(jnp.bfloat16)

    # Pass-2 validity mask (1 inside the original HxW image), stored bf16.
    rr = jnp.arange(hp * wp, dtype=jnp.int32) // wp
    cc = jnp.arange(hp * wp, dtype=jnp.int32) % wp
    valid = ((rr >= padding) & (rr < padding + H)
             & (cc >= padding) & (cc < padding + W)).astype(jnp.bfloat16)
    mask = jnp.pad(valid, (0, l_pad - hp * wp)).reshape(1, l_pad)

    # Fused-MFM weights: single matmul per site, MFM = max over sublane halves.
    w1c = w1[:, :, 0, 0].astype(jnp.bfloat16)                      # (2*cin, cin)
    b1c = b1.reshape(2 * cin, 1).astype(jnp.float32)
    # Stacked-tap kxk weight: column order (kh, kw, ci) matches the zs buffer rows.
    w2c = jnp.transpose(w2, (0, 2, 3, 1)).reshape(2 * cout, ksz * ksz * cin)
    w2c = w2c.astype(jnp.bfloat16)                                 # (2*cout, k*k*cin)
    b2c = b2.reshape(2 * cout, 1).astype(jnp.float32)

    # ---- pass 1: BN batch statistics (mask-free) ----
    s1, s2 = pl.pallas_call(
        _stats_kernel,
        out_shape=(jax.ShapeDtypeStruct((N, cin, 1), jnp.float32),
                   jax.ShapeDtypeStruct((N, cin, 1), jnp.float32)),
        grid=(N, n_lt),
        in_specs=[
            pl.BlockSpec((1, cin, tl), lambda n, l: (n, 0, l)),
            pl.BlockSpec((2 * cin, cin), lambda n, l: (0, 0)),
            pl.BlockSpec((2 * cin, 1), lambda n, l: (0, 0)),
        ],
        out_specs=(pl.BlockSpec((1, cin, 1), lambda n, l: (n, 0, 0)),
                   pl.BlockSpec((1, cin, 1), lambda n, l: (n, 0, 0))),
        compiler_params=pltpu.CompilerParams(
            dimension_semantics=("parallel", "arbitrary"),
            vmem_limit_bytes=32 * 1024 * 1024),
    )(xpf, w1c, b1c)

    # Every padded / out-of-image flat position has x == 0, so MFM(conv1x1) there is
    # exactly max(b1_a, b1_b) per channel -> remove that constant contribution.
    mfm_bias = jnp.maximum(b1[:cin], b1[cin:]).reshape(cin, 1).astype(jnp.float32)
    pad_count = float(l_pad - H * W)            # invalid flat positions per image
    m_total = N * H * W
    sum1 = jnp.sum(s1, axis=0) - N * pad_count * mfm_bias
    sum2 = jnp.sum(s2, axis=0) - N * pad_count * mfm_bias * mfm_bias
    mean = sum1 / m_total                                          # (cin, 1) f32
    var = jnp.maximum(sum2 / m_total - mean * mean, 0.0)           # biased (BN training)
    scale = gamma.reshape(cin, 1) * lax.rsqrt(var + BN_EPS)
    shift = beta.reshape(cin, 1) - mean * scale

    # ---- pass 2: fused 1x1+MFM+BN + kxk conv (stacked-tap matmul) + MFM ----
    kernel = functools.partial(_fused_group_kernel, ksz, wp, stride)
    out = pl.pallas_call(
        kernel,
        out_shape=jax.ShapeDtypeStruct((N, cout, q_pad), jnp.float32),
        grid=(N,),
        in_specs=[
            pl.BlockSpec((1, cin, l_pad), lambda n: (n, 0, 0)),
            pl.BlockSpec((1, l_pad), lambda n: (0, 0)),
            pl.BlockSpec((2 * cin, cin), lambda n: (0, 0)),
            pl.BlockSpec((2 * cin, 1), lambda n: (0, 0)),
            pl.BlockSpec((cin, 1), lambda n: (0, 0)),
            pl.BlockSpec((cin, 1), lambda n: (0, 0)),
            pl.BlockSpec((2 * cout, ksz * ksz * cin), lambda n: (0, 0)),
            pl.BlockSpec((2 * cout, 1), lambda n: (0, 0)),
        ],
        out_specs=pl.BlockSpec((1, cout, q_pad), lambda n: (n, 0, 0)),
        scratch_shapes=[pltpu.VMEM((cin, l_pad), jnp.bfloat16),
                        pltpu.VMEM((ksz * ksz * cin, q_pad), jnp.bfloat16)],
        compiler_params=pltpu.CompilerParams(
            dimension_semantics=("parallel",),
            vmem_limit_bytes=32 * 1024 * 1024),
    )(xpf, mask, w1c, b1c, scale, shift, w2c, b2c)

    # (N, cout, Hout*Wp padded) -> NCHW: drop padded columns (no transpose needed).
    out = out[:, :, :q].reshape(N, cout, hout, wp)[:, :, :, :wout]
    return out


# ---------------------------------------------------------------------------
# Pure-JAX reference (lax.conv); matmul_dtype=bfloat16 gives the quantization-
# matched baseline for the bf16 MXU path.
# ---------------------------------------------------------------------------
def group_reference(x, w1, b1, gamma, beta, w2, b2, stride=1, padding=1,
                    matmul_dtype=jnp.float32):
    cin = x.shape[1]
    cout = w2.shape[0] // 2
    y = lax.conv_general_dilated(
        x.astype(matmul_dtype), w1.astype(matmul_dtype), (1, 1), "VALID",
        dimension_numbers=("NCHW", "OIHW", "NCHW"),
        preferred_element_type=jnp.float32)
    y = y + b1[None, :, None, None]
    m = jnp.maximum(y[:, :cin], y[:, cin:])
    mean = jnp.mean(m, axis=(0, 2, 3), keepdims=True)
    var = jnp.mean((m - mean) ** 2, axis=(0, 2, 3), keepdims=True)
    z = gamma[None, :, None, None] * (m - mean) * lax.rsqrt(var + BN_EPS) \
        + beta[None, :, None, None]
    y2 = lax.conv_general_dilated(
        z.astype(matmul_dtype), w2.astype(matmul_dtype), (stride, stride),
        [(padding, padding), (padding, padding)],
        dimension_numbers=("NCHW", "OIHW", "NCHW"),
        preferred_element_type=jnp.float32)
    y2 = y2 + b2[None, :, None, None]
    return jnp.maximum(y2[:, :cout], y2[:, cout:])


if __name__ == "__main__":
    # group(in_channels=4, out_channels=8, kernel_size=3, stride=1, padding=1, depth=4)
    N, Cin, H, W = 2, 4, 16, 16
    Cout, K, STRIDE, PAD = 8, 3, 1, 1

    key = jax.random.PRNGKey(0)
    k1, k2, k3, k4, k5, k6, kx = jax.random.split(key, 7)
    w1 = 0.2 * jax.random.normal(k1, (2 * Cin, Cin, 1, 1), jnp.float32)   # conv_a weight
    b1 = 0.1 * jax.random.normal(k2, (2 * Cin,), jnp.float32)             # conv_a bias
    gamma = 1.0 + 0.1 * jax.random.normal(k3, (Cin,), jnp.float32)        # BN weight
    beta = 0.1 * jax.random.normal(k4, (Cin,), jnp.float32)               # BN bias
    w2 = 0.1 * jax.random.normal(k5, (2 * Cout, Cin, K, K), jnp.float32)  # conv weight
    b2 = 0.1 * jax.random.normal(k6, (2 * Cout,), jnp.float32)            # conv bias
    x = jax.random.normal(kx, (N, Cin, H, W), jnp.float32)

    out = group_forward(x, w1, b1, gamma, beta, w2, b2, stride=STRIDE, padding=PAD)
    out = jax.block_until_ready(out)
    assert out.shape == (N, Cout, H, W), out.shape

    # Quantization-matched reference (bf16 conv operands, f32 stats/accumulation).
    ref_bf16 = group_reference(x, w1, b1, gamma, beta, w2, b2, STRIDE, PAD,
                               matmul_dtype=jnp.bfloat16)
    assert jnp.allclose(out, ref_bf16, atol=1e-2, rtol=1e-2), \
        float(jnp.max(jnp.abs(out - ref_bf16)))

    # Full-f32 reference, looser tolerance (kernel intentionally uses bf16 MXU operands).
    ref_f32 = group_reference(x, w1, b1, gamma, beta, w2, b2, STRIDE, PAD,
                              matmul_dtype=jnp.float32)
    assert jnp.allclose(out, ref_f32, atol=8e-2, rtol=8e-2), \
        float(jnp.max(jnp.abs(out - ref_f32)))

    print("KERNEL_OK")
</pallas_src>

<mosaic_0001>
module attributes {stable_mosaic.version = 11 : i64} {
  func.func @_fused_group_kernel(%arg0: i32, %arg1: memref<1x4x512xbf16, #tpu.memory_space<vmem>>, %arg2: memref<1x512xbf16, #tpu.memory_space<vmem>>, %arg3: memref<8x4xbf16, #tpu.memory_space<vmem>>, %arg4: memref<8x1xf32, #tpu.memory_space<vmem>>, %arg5: memref<4x1xf32, #tpu.memory_space<vmem>>, %arg6: memref<4x1xf32, #tpu.memory_space<vmem>>, %arg7: memref<16x36xbf16, #tpu.memory_space<vmem>>, %arg8: memref<16x1xf32, #tpu.memory_space<vmem>>, %arg9: memref<1x8x384xf32, #tpu.memory_space<vmem>>, %arg10: memref<4x512xbf16, #tpu.memory_space<vmem>>, %arg11: memref<36x384xbf16, #tpu.memory_space<vmem>>) attributes {dimension_semantics = [#tpu.dimension_semantics<parallel>], iteration_bounds = array<i64: 2>, scalar_prefetch = 0 : i64, scratch_operands = 2 : i64, tpu.core_type = #tpu.core_type<tc>, window_params = [{transform_indices = @transform_0, window_bounds = array<i64: 1, 4, 512>}, {pipeline_mode = #tpu.pipeline_mode<synchronous>, transform_indices = @transform_1, window_bounds = array<i64: 1, 512>}, {pipeline_mode = #tpu.pipeline_mode<synchronous>, transform_indices = @transform_2, window_bounds = array<i64: 8, 4>}, {pipeline_mode = #tpu.pipeline_mode<synchronous>, transform_indices = @transform_3, window_bounds = array<i64: 8, 1>}, {pipeline_mode = #tpu.pipeline_mode<synchronous>, transform_indices = @transform_4, window_bounds = array<i64: 4, 1>}, {pipeline_mode = #tpu.pipeline_mode<synchronous>, transform_indices = @transform_5, window_bounds = array<i64: 4, 1>}, {pipeline_mode = #tpu.pipeline_mode<synchronous>, transform_indices = @transform_6, window_bounds = array<i64: 16, 36>}, {pipeline_mode = #tpu.pipeline_mode<synchronous>, transform_indices = @transform_7, window_bounds = array<i64: 16, 1>}, {transform_indices = @transform_8, window_bounds = array<i64: 1, 8, 384>}]} {
    %c0 = arith.constant 0 : index
    %c0_0 = arith.constant 0 : index
    %c0_1 = arith.constant 0 : index
    %0 = vector.load %arg1[%c0, %c0_0, %c0_1] : memref<1x4x512xbf16, #tpu.memory_space<vmem>>, vector<1x4x512xbf16>
    %1 = vector.shape_cast %0 : vector<1x4x512xbf16> to vector<4x512xbf16>
    %c0_2 = arith.constant 0 : index
    %c0_3 = arith.constant 0 : index
    %2 = vector.load %arg3[%c0_2, %c0_3] : memref<8x4xbf16, #tpu.memory_space<vmem>>, vector<8x4xbf16>
    %cst = arith.constant dense<0.000000e+00> : vector<8x512xf32>
    %3 = tpu.matmul %2, %1, %cst {dimension_numbers = #tpu.dot_dimension_numbers<[1], [0], [0], [1], [0, 0, 1, 1], [], []>} : vector<8x4xbf16>, vector<4x512xbf16>, vector<8x512xf32> -> vector<8x512xf32>
    %c0_4 = arith.constant 0 : index
    %c0_5 = arith.constant 0 : index
    %4 = vector.load %arg4[%c0_4, %c0_5] : memref<8x1xf32, #tpu.memory_space<vmem>>, vector<8x1xf32>
    %5 = vector.broadcast %4 : vector<8x1xf32> to vector<8x512xf32>
    %6 = arith.addf %3, %5 : vector<8x512xf32>
    %7 = vector.extract_strided_slice %6 {offsets = [0, 0], sizes = [4, 512], strides = [1, 1]} : vector<8x512xf32> to vector<4x512xf32>
    %8 = vector.extract_strided_slice %6 {offsets = [4, 0], sizes = [4, 512], strides = [1, 1]} : vector<8x512xf32> to vector<4x512xf32>
    %9 = arith.maximumf %7, %8 : vector<4x512xf32>
    %c0_6 = arith.constant 0 : index
    %c0_7 = arith.constant 0 : index
    %10 = vector.load %arg5[%c0_6, %c0_7] : memref<4x1xf32, #tpu.memory_space<vmem>>, vector<4x1xf32>
    %11 = vector.broadcast %10 : vector<4x1xf32> to vector<4x512xf32>
    %12 = arith.mulf %11, %9 : vector<4x512xf32>
    %c0_8 = arith.constant 0 : index
    %c0_9 = arith.constant 0 : index
    %13 = vector.load %arg6[%c0_8, %c0_9] : memref<4x1xf32, #tpu.memory_space<vmem>>, vector<4x1xf32>
    %14 = vector.broadcast %13 : vector<4x1xf32> to vector<4x512xf32>
    %15 = arith.addf %12, %14 : vector<4x512xf32>
    %c0_10 = arith.constant 0 : index
    %c0_11 = arith.constant 0 : index
    %16 = vector.load %arg2[%c0_10, %c0_11] : memref<1x512xbf16, #tpu.memory_space<vmem>>, vector<1x512xbf16>
    %17 = arith.extf %16 : vector<1x512xbf16> to vector<1x512xf32>
    %18 = vector.broadcast %17 : vector<1x512xf32> to vector<4x512xf32>
    %19 = arith.mulf %15, %18 : vector<4x512xf32>
    %20 = arith.truncf %19 : vector<4x512xf32> to vector<4x512xbf16>
    %c0_12 = arith.constant 0 : index
    %c0_13 = arith.constant 0 : index
    %21 = vector.load %arg10[%c0_12, %c0_13] : memref<4x512xbf16, #tpu.memory_space<vmem>>, vector<4x512xbf16>
    tpu.vector_store %arg10[%c0_12, %c0_13], %20 {strides = array<i32>} : memref<4x512xbf16, #tpu.memory_space<vmem>>, vector<4x512xbf16>,
    %c0_14 = arith.constant 0 : index
    %c0_15 = arith.constant 0 : index
    %22 = vector.load %arg10[%c0_14, %c0_15] : memref<4x512xbf16, #tpu.memory_space<vmem>>, vector<4x384xbf16>
    %c0_16 = arith.constant 0 : index
    %c0_17 = arith.constant 0 : index
    %23 = vector.load %arg11[%c0_16, %c0_17] : memref<36x384xbf16, #tpu.memory_space<vmem>>, vector<4x384xbf16>
    tpu.vector_store %arg11[%c0_16, %c0_17], %22 {strides = array<i32>} : memref<36x384xbf16, #tpu.memory_space<vmem>>, vector<4x384xbf16>,
    %c0_18 = arith.constant 0 : index
    %c1 = arith.constant 1 : index
    %24 = vector.load %arg10[%c0_18, %c1] : memref<4x512xbf16, #tpu.memory_space<vmem>>, vector<4x384xbf16>
    %c4 = arith.constant 4 : index
    %c0_19 = arith.constant 0 : index
    %25 = vector.load %arg11[%c4, %c0_19] : memref<36x384xbf16, #tpu.memory_space<vmem>>, vector<4x384xbf16>
    tpu.vector_store %arg11[%c4, %c0_19], %24 {strides = array<i32>} : memref<36x384xbf16, #tpu.memory_space<vmem>>, vector<4x384xbf16>,
    %c0_20 = arith.constant 0 : index
    %c2 = arith.constant 2 : index
    %26 = vector.load %arg10[%c0_20, %c2] : memref<4x512xbf16, #tpu.memory_space<vmem>>, vector<4x384xbf16>
    %c8 = arith.constant 8 : index
    %c0_21 = arith.constant 0 : index
    %27 = vector.load %arg11[%c8, %c0_21] : memref<36x384xbf16, #tpu.memory_space<vmem>>, vector<4x384xbf16>
    tpu.vector_store %arg11[%c8, %c0_21], %26 {strides = array<i32>} : memref<36x384xbf16, #tpu.memory_space<vmem>>, vector<4x384xbf16>,
    %c0_22 = arith.constant 0 : index
    %c18 = arith.constant 18 : index
    %28 = vector.load %arg10[%c0_22, %c18] : memref<4x512xbf16, #tpu.memory_space<vmem>>, vector<4x384xbf16>
    %c12 = arith.constant 12 : index
    %c0_23 = arith.constant 0 : index
    %29 = vector.load %arg11[%c12, %c0_23] : memref<36x384xbf16, #tpu.memory_space<vmem>>, vector<4x384xbf16>
    tpu.vector_store %arg11[%c12, %c0_23], %28 {strides = array<i32>} : memref<36x384xbf16, #tpu.memory_space<vmem>>, vector<4x384xbf16>,
    %c0_24 = arith.constant 0 : index
    %c19 = arith.constant 19 : index
    %30 = vector.load %arg10[%c0_24, %c19] : memref<4x512xbf16, #tpu.memory_space<vmem>>, vector<4x384xbf16>
    %c16 = arith.constant 16 : index
    %c0_25 = arith.constant 0 : index
    %31 = vector.load %arg11[%c16, %c0_25] : memref<36x384xbf16, #tpu.memory_space<vmem>>, vector<4x384xbf16>
    tpu.vector_store %arg11[%c16, %c0_25], %30 {strides = array<i32>} : memref<36x384xbf16, #tpu.memory_space<vmem>>, vector<4x384xbf16>,
    %c0_26 = arith.constant 0 : index
    %c20 = arith.constant 20 : index
    %32 = vector.load %arg10[%c0_26, %c20] : memref<4x512xbf16, #tpu.memory_space<vmem>>, vector<4x384xbf16>
    %c20_27 = arith.constant 20 : index
    %c0_28 = arith.constant 0 : index
    %33 = vector.load %arg11[%c20_27, %c0_28] : memref<36x384xbf16, #tpu.memory_space<vmem>>, vector<4x384xbf16>
    tpu.vector_store %arg11[%c20_27, %c0_28], %32 {strides = array<i32>} : memref<36x384xbf16, #tpu.memory_space<vmem>>, vector<4x384xbf16>,
    %c0_29 = arith.constant 0 : index
    %c36 = arith.constant 36 : index
    %34 = vector.load %arg10[%c0_29, %c36] : memref<4x512xbf16, #tpu.memory_space<vmem>>, vector<4x384xbf16>
    %c24 = arith.constant 24 : index
    %c0_30 = arith.constant 0 : index
    %35 = vector.load %arg11[%c24, %c0_30] : memref<36x384xbf16, #tpu.memory_space<vmem>>, vector<4x384xbf16>
    tpu.vector_store %arg11[%c24, %c0_30], %34 {strides = array<i32>} : memref<36x384xbf16, #tpu.memory_space<vmem>>, vector<4x384xbf16>,
    %c0_31 = arith.constant 0 : index
    %c37 = arith.constant 37 : index
    %36 = vector.load %arg10[%c0_31, %c37] : memref<4x512xbf16, #tpu.memory_space<vmem>>, vector<4x384xbf16>
    %c28 = arith.constant 28 : index
    %c0_32 = arith.constant 0 : index
    %37 = vector.load %arg11[%c28, %c0_32] : memref<36x384xbf16, #tpu.memory_space<vmem>>, vector<4x384xbf16>
    tpu.vector_store %arg11[%c28, %c0_32], %36 {strides = array<i32>} : memref<36x384xbf16, #tpu.memory_space<vmem>>, vector<4x384xbf16>,
    %c0_33 = arith.constant 0 : index
    %c38 = arith.constant 38 : index
    %38 = vector.load %arg10[%c0_33, %c38] : memref<4x512xbf16, #tpu.memory_space<vmem>>, vector<4x384xbf16>
    %c32 = arith.constant 32 : index
    %c0_34 = arith.constant 0 : index
    %39 = vector.load %arg11[%c32, %c0_34] : memref<36x384xbf16, #tpu.memory_space<vmem>>, vector<4x384xbf16>
    tpu.vector_store %arg11[%c32, %c0_34], %38 {strides = array<i32>} : memref<36x384xbf16, #tpu.memory_space<vmem>>, vector<4x384xbf16>,
    %c0_35 = arith.constant 0 : index
    %c0_36 = arith.constant 0 : index
    %40 = vector.load %arg7[%c0_35, %c0_36] : memref<16x36xbf16, #tpu.memory_space<vmem>>, vector<16x36xbf16>
    %c0_37 = arith.constant 0 : index
    %c0_38 = arith.constant 0 : index
    %41 = vector.load %arg11[%c0_37, %c0_38] : memref<36x384xbf16, #tpu.memory_space<vmem>>, vector<36x384xbf16>
    %cst_39 = arith.constant dense<0.000000e+00> : vector<16x384xf32>
    %42 = tpu.matmul %40, %41, %cst_39 {dimension_numbers = #tpu.dot_dimension_numbers<[1], [0], [0], [1], [0, 0, 1, 1], [], []>} : vector<16x36xbf16>, vector<36x384xbf16>, vector<16x384xf32> -> vector<16x384xf32>
    %c0_40 = arith.constant 0 : index
    %c0_41 = arith.constant 0 : index
    %43 = vector.load %arg8[%c0_40, %c0_41] : memref<16x1xf32, #tpu.memory_space<vmem>>, vector<16x1xf32>
    %44 = vector.broadcast %43 : vector<16x1xf32> to vector<16x384xf32>
    %45 = arith.addf %42, %44 : vector<16x384xf32>
    %46 = vector.extract_strided_slice %45 {offsets = [0, 0], sizes = [8, 384], strides = [1, 1]} : vector<16x384xf32> to vector<8x384xf32>
    %47 = vector.extract_strided_slice %45 {offsets = [8, 0], sizes = [8, 384], strides = [1, 1]} : vector<16x384xf32> to vector<8x384xf32>
    %48 = arith.maximumf %46, %47 : vector<8x384xf32>
    %c0_42 = arith.constant 0 : index
    %c0_43 = arith.constant 0 : index
    %c0_44 = arith.constant 0 : index
    %49 = vector.load %arg9[%c0_42, %c0_43, %c0_44] : memref<1x8x384xf32, #tpu.memory_space<vmem>>, vector<1x8x384xf32>
    %50 = vector.shape_cast %49 : vector<1x8x384xf32> to vector<8x384xf32>
    %51 = vector.shape_cast %48 : vector<8x384xf32> to vector<1x8x384xf32>
    tpu.vector_store %arg9[%c0_42, %c0_43, %c0_44], %51 {strides = array<i32>} : memref<1x8x384xf32, #tpu.memory_space<vmem>>, vector<1x8x384xf32>,
    return
  }
  func.func @transform_0(%arg0: i32) -> (i32, i32, i32) {
    %c0_i32 = arith.constant 0 : i32
    %c0_i32_0 = arith.constant 0 : i32
    %c0_i32_1 = arith.constant 0 : i32
    return %arg0, %c0_i32, %c0_i32_0 : i32, i32, i32
  }
  func.func @transform_1(%arg0: i32) -> (i32, i32) {
    %c0_i32 = arith.constant 0 : i32
    %c0_i32_0 = arith.constant 0 : i32
    %c0_i32_1 = arith.constant 0 : i32
    return %c0_i32, %c0_i32_0 : i32, i32
  }
  func.func @transform_2(%arg0: i32) -> (i32, i32) {
    %c0_i32 = arith.constant 0 : i32
    %c0_i32_0 = arith.constant 0 : i32
    %c0_i32_1 = arith.constant 0 : i32
    return %c0_i32, %c0_i32_0 : i32, i32
  }
  func.func @transform_3(%arg0: i32) -> (i32, i32) {
    %c0_i32 = arith.constant 0 : i32
    %c0_i32_0 = arith.constant 0 : i32
    %c0_i32_1 = arith.constant 0 : i32
    return %c0_i32, %c0_i32_0 : i32, i32
  }
  func.func @transform_4(%arg0: i32) -> (i32, i32) {
    %c0_i32 = arith.constant 0 : i32
    %c0_i32_0 = arith.constant 0 : i32
    %c0_i32_1 = arith.constant 0 : i32
    return %c0_i32, %c0_i32_0 : i32, i32
  }
  func.func @transform_5(%arg0: i32) -> (i32, i32) {
    %c0_i32 = arith.constant 0 : i32
    %c0_i32_0 = arith.constant 0 : i32
    %c0_i32_1 = arith.constant 0 : i32
    return %c0_i32, %c0_i32_0 : i32, i32
  }
  func.func @transform_6(%arg0: i32) -> (i32, i32) {
    %c0_i32 = arith.constant 0 : i32
    %c0_i32_0 = arith.constant 0 : i32
    %c0_i32_1 = arith.constant 0 : i32
    return %c0_i32, %c0_i32_0 : i32, i32
  }
  func.func @transform_7(%arg0: i32) -> (i32, i32) {
    %c0_i32 = arith.constant 0 : i32
    %c0_i32_0 = arith.constant 0 : i32
    %c0_i32_1 = arith.constant 0 : i32
    return %c0_i32, %c0_i32_0 : i32, i32
  }
  func.func @transform_8(%arg0: i32) -> (i32, i32, i32) {
    %c0_i32 = arith.constant 0 : i32
    %c0_i32_0 = arith.constant 0 : i32
    %c0_i32_1 = arith.constant 0 : i32
    return %arg0, %c0_i32, %c0_i32_0 : i32, i32, i32
  }
}

module attributes {stable_mosaic.version = 11 : i64} {
  func.func @_stats_kernel(%arg0: i32, %arg1: i32, %arg2: memref<1x4x512xbf16, #tpu.memory_space<vmem>>, %arg3: memref<8x4xbf16, #tpu.memory_space<vmem>>, %arg4: memref<8x1xf32, #tpu.memory_space<vmem>>, %arg5: memref<1x4x1xf32, #tpu.memory_space<vmem>>, %arg6: memref<1x4x1xf32, #tpu.memory_space<vmem>>) attributes {dimension_semantics = [#tpu.dimension_semantics<parallel>, #tpu.dimension_semantics<arbitrary>], iteration_bounds = array<i64: 2, 1>, scalar_prefetch = 0 : i64, scratch_operands = 0 : i64, tpu.core_type = #tpu.core_type<tc>, window_params = [{transform_indices = @transform_0, window_bounds = array<i64: 1, 4, 512>}, {pipeline_mode = #tpu.pipeline_mode<synchronous>, transform_indices = @transform_1, window_bounds = array<i64: 8, 4>}, {pipeline_mode = #tpu.pipeline_mode<synchronous>, transform_indices = @transform_2, window_bounds = array<i64: 8, 1>}, {transform_indices = @transform_3, window_bounds = array<i64: 1, 4, 1>}, {transform_indices = @transform_4, window_bounds = array<i64: 1, 4, 1>}]} {
    %c0_i32 = arith.constant 0 : i32
    %0 = arith.cmpi eq, %arg1, %c0_i32 : i32
    %1 = arith.extui %0 : i1 to i32
    %c0_i32_0 = arith.constant 0 : i32
    %2 = arith.cmpi ne, %1, %c0_i32_0 : i32
    scf.if %2 {
      %cst_21 = arith.constant 0.000000e+00 : f32
      %26 = vector.broadcast %cst_21 : f32 to vector<1x4x1xf32>
      %c0_22 = arith.constant 0 : index
      %c0_23 = arith.constant 0 : index
      %c0_24 = arith.constant 0 : index
      %27 = vector.load %arg5[%c0_22, %c0_23, %c0_24] : memref<1x4x1xf32, #tpu.memory_space<vmem>>, vector<1x4x1xf32>
      tpu.vector_store %arg5[%c0_22, %c0_23, %c0_24], %26 {strides = array<i32>} : memref<1x4x1xf32, #tpu.memory_space<vmem>>, vector<1x4x1xf32>,
      %cst_25 = arith.constant 0.000000e+00 : f32
      %28 = vector.broadcast %cst_25 : f32 to vector<1x4x1xf32>
      %c0_26 = arith.constant 0 : index
      %c0_27 = arith.constant 0 : index
      %c0_28 = arith.constant 0 : index
      %29 = vector.load %arg6[%c0_26, %c0_27, %c0_28] : memref<1x4x1xf32, #tpu.memory_space<vmem>>, vector<1x4x1xf32>
      tpu.vector_store %arg6[%c0_26, %c0_27, %c0_28], %28 {strides = array<i32>} : memref<1x4x1xf32, #tpu.memory_space<vmem>>, vector<1x4x1xf32>,
    } else {
    }
    %c0 = arith.constant 0 : index
    %c0_1 = arith.constant 0 : index
    %c0_2 = arith.constant 0 : index
    %3 = vector.load %arg2[%c0, %c0_1, %c0_2] : memref<1x4x512xbf16, #tpu.memory_space<vmem>>, vector<1x4x512xbf16>
    %4 = vector.shape_cast %3 : vector<1x4x512xbf16> to vector<4x512xbf16>
    %c0_3 = arith.constant 0 : index
    %c0_4 = arith.constant 0 : index
    %5 = vector.load %arg3[%c0_3, %c0_4] : memref<8x4xbf16, #tpu.memory_space<vmem>>, vector<8x4xbf16>
    %cst = arith.constant dense<0.000000e+00> : vector<8x512xf32>
    %6 = tpu.matmul %5, %4, %cst {dimension_numbers = #tpu.dot_dimension_numbers<[1], [0], [0], [1], [0, 0, 1, 1], [], []>} : vector<8x4xbf16>, vector<4x512xbf16>, vector<8x512xf32> -> vector<8x512xf32>
    %c0_5 = arith.constant 0 : index
    %c0_6 = arith.constant 0 : index
    %7 = vector.load %arg4[%c0_5, %c0_6] : memref<8x1xf32, #tpu.memory_space<vmem>>, vector<8x1xf32>
    %8 = vector.broadcast %7 : vector<8x1xf32> to vector<8x512xf32>
    %9 = arith.addf %6, %8 : vector<8x512xf32>
    %10 = vector.extract_strided_slice %9 {offsets = [0, 0], sizes = [4, 512], strides = [1, 1]} : vector<8x512xf32> to vector<4x512xf32>
    %11 = vector.extract_strided_slice %9 {offsets = [4, 0], sizes = [4, 512], strides = [1, 1]} : vector<8x512xf32> to vector<4x512xf32>
    %12 = arith.maximumf %10, %11 : vector<4x512xf32>
    %c0_7 = arith.constant 0 : index
    %c0_8 = arith.constant 0 : index
    %c0_9 = arith.constant 0 : index
    %13 = vector.load %arg5[%c0_7, %c0_8, %c0_9] : memref<1x4x1xf32, #tpu.memory_space<vmem>>, vector<1x4x1xf32>
    %cst_10 = arith.constant dense<0.000000e+00> : vector<4xf32>
    %14 = vector.multi_reduction <add>, %12, %cst_10 [1] : vector<4x512xf32> to vector<4xf32>
    %15 = vector.shape_cast %14 : vector<4xf32> to vector<4x1xf32>
    %16 = vector.shape_cast %15 : vector<4x1xf32> to vector<1x4x1xf32>
    %17 = arith.addf %13, %16 : vector<1x4x1xf32>
    %c0_11 = arith.constant 0 : index
    %c0_12 = arith.constant 0 : index
    %c0_13 = arith.constant 0 : index
    %18 = vector.load %arg5[%c0_11, %c0_12, %c0_13] : memref<1x4x1xf32, #tpu.memory_space<vmem>>, vector<1x4x1xf32>
    tpu.vector_store %arg5[%c0_11, %c0_12, %c0_13], %17 {strides = array<i32>} : memref<1x4x1xf32, #tpu.memory_space<vmem>>, vector<1x4x1xf32>,
    %c0_14 = arith.constant 0 : index
    %c0_15 = arith.constant 0 : index
    %c0_16 = arith.constant 0 : index
    %19 = vector.load %arg6[%c0_14, %c0_15, %c0_16] : memref<1x4x1xf32, #tpu.memory_space<vmem>>, vector<1x4x1xf32>
    %20 = arith.mulf %12, %12 : vector<4x512xf32>
    %cst_17 = arith.constant dense<0.000000e+00> : vector<4xf32>
    %21 = vector.multi_reduction <add>, %20, %cst_17 [1] : vector<4x512xf32> to vector<4xf32>
    %22 = vector.shape_cast %21 : vector<4xf32> to vector<4x1xf32>
    %23 = vector.shape_cast %22 : vector<4x1xf32> to vector<1x4x1xf32>
    %24 = arith.addf %19, %23 : vector<1x4x1xf32>
    %c0_18 = arith.constant 0 : index
    %c0_19 = arith.constant 0 : index
    %c0_20 = arith.constant 0 : index
    %25 = vector.load %arg6[%c0_18, %c0_19, %c0_20] : memref<1x4x1xf32, #tpu.memory_space<vmem>>, vector<1x4x1xf32>
    tpu.vector_store %arg6[%c0_18, %c0_19, %c0_20], %24 {strides = array<i32>} : memref<1x4x1xf32, #tpu.memory_space<vmem>>, vector<1x4x1xf32>,
    return
  }
  func.func @transform_0(%arg0: i32, %arg1: i32) -> (i32, i32, i32) {
    %c0_i32 = arith.constant 0 : i32
    %c0_i32_0 = arith.constant 0 : i32
    return %arg0, %c0_i32, %arg1 : i32, i32, i32
  }
  func.func @transform_1(%arg0: i32, %arg1: i32) -> (i32, i32) {
    %c0_i32 = arith.constant 0 : i32
    %c0_i32_0 = arith.constant 0 : i32
    %c0_i32_1 = arith.constant 0 : i32
    return %c0_i32, %c0_i32_0 : i32, i32
  }
  func.func @transform_2(%arg0: i32, %arg1: i32) -> (i32, i32) {
    %c0_i32 = arith.constant 0 : i32
    %c0_i32_0 = arith.constant 0 : i32
    %c0_i32_1 = arith.constant 0 : i32
    return %c0_i32, %c0_i32_0 : i32, i32
  }
  func.func @transform_3(%arg0: i32, %arg1: i32) -> (i32, i32, i32) {
    %c0_i32 = arith.constant 0 : i32
    %c0_i32_0 = arith.constant 0 : i32
    %c0_i32_1 = arith.constant 0 : i32
    return %arg0, %c0_i32, %c0_i32_0 : i32, i32, i32
  }
  func.func @transform_4(%arg0: i32, %arg1: i32) -> (i32, i32, i32) {
    %c0_i32 = arith.constant 0 : i32
    %c0_i32_0 = arith.constant 0 : i32
    %c0_i32_1 = arith.constant 0 : i32
    return %arg0, %c0_i32, %c0_i32_0 : i32, i32, i32
  }
}

</mosaic_0001>

<llo_original>
// kernel: group_forward.2
$region0: #{group_forward.2}
  #allocation0 [shape = 'u32[]', space=smem, size = 0x4, offset = 0x4, fixed_abs, tag = 'smem constant byte address 0x4 - core index']
  #allocation1 [shape = 'u32[72,128]{1,0:T(1,128)}', space=vmem, size = 0x9000, scoped, tag = 'internal scratch']
  %s0 = inlined_call_operand.vmem [shape: bf16[2,4,512], index: 0, kind: input, shape index: {}]
  %s1 = inlined_call_operand.vmem [shape: bf16[8,4], index: 1, kind: input, shape index: {}]
  %s2 = inlined_call_operand.vmem [shape: f32[8,1], index: 2, kind: input, shape index: {}]
  %s3 = inlined_call_operand.vmem [shape: f32[2,4,1], index: 3, kind: output, shape index: {0}]
  %s4 = inlined_call_operand.vmem [shape: f32[2,4,1], index: 4, kind: output, shape index: {1}]
  %5 = xla_tuple %s3, %s4
  %s6 = sld [smem:[#allocation0]]
  $region57: #{group_forward.2} parent=0
    _
  %s8 = ssub.s32 1, %s6
  %s9 = scalar_select 0, %s8, %s6
  loop: start=0, step=1, limit=4
  $region2: #{group_forward.2} parent=0 // loop_pre_header
    _
  $region3: #{group_forward.2} parent=0 // loop_header
    %s11 = sphi 0, %s15
    %p12 = scmp.ge.s32.totalorder %s11, 4
    %s18 = sphi 0, %s30
    %s19 = sphi 0, %s26
    %s20 = sphi 0, %s18
    %s21 = sphi 0, %s19
    %s22 = sphi 0, %s20
    %s23 = sphi 0, %s21
    %s35 = sphi 0, %s37
    %s38 = sphi 0, %s35
    %s39 = sphi 0, %s38
    %s55 = sphi 0, %s39
    %s59 = sphi 0, %s59
    %s61 = sphi 0, %s59
    %s62 = sphi 0, %s61
    %s76 = sphi 0, %s62
    %s80 = sphi 0, %s80
    %s82 = sphi 0, %s80
    %s83 = sphi 0, %s82
    %s97 = sphi 0, %s83
    %s103 = sphi 0, %s105
    %s106 = sphi 0, %s103
    %s107 = sphi 0, %s106
    %s123 = sphi 0, %s107
    %s129 = sphi 0, %s131
    %s132 = sphi 0, %s129
    %s133 = sphi 0, %s132
    %s149 = sphi 0, %s133
  $region4: #{group_forward.2} parent=0 // loop_header_branch
    %14 = sbr.rel (%p12) target = $region8
  $region5: #{group_forward.2} parent=0 // loop_body
    %s16 = ssub.s32 %s11, 1
    %s17 = ssub.s32 %s11, 2
    %s24 = sadd.s32 1, %s19
    %p25 = scmp.ge.s32.totalorder %s24, 1
    %s26 = scalar_select %p25, 0, %s24
    %s27 = sadd.s32 1, %s18
    %s28 = scalar_select %p25, %s27, %s18
    %p29 = scmp.ge.s32.totalorder %s28, 2
    %s30 = scalar_select %p29, 0, %s28
    %s31 = ssub.s32 %s18, %s30
    %s32 = ssub.s32 %s19, %s26
    %s33 = sor.u32 %s31, %s32
    %p34 = scmp.eq.s32.totalorder %s33, 0
    %s36 = sadd.s32 %s35, 1
    %s37 = scalar_select %p34, %s35, %s36
    %p40 = pneg %p34
    %p41 = scmp.eq.s32.totalorder %s11, 1
    %p42 = por %p40, %p41
    %p43 = scmp.ne.s32.totalorder %s35, %s38
    %p44 = scmp.eq.s32.totalorder %s11, 0
    %p45 = por %p43, %p44
    %p46 = scmp.ne.s32.totalorder %s35, %s38
    %p47 = scmp.eq.s32.totalorder %s16, 1
    %p48 = por %p46, %p47
    %p49 = scmp.ne.s32.totalorder %s38, %s39
    %p50 = scmp.eq.s32.totalorder %s16, 0
    %p51 = por %p49, %p50
    %p52 = scmp.ne.s32.totalorder %s38, %s39
    %p53 = scmp.eq.s32.totalorder %s17, 1
    %p54 = por %p52, %p53
    %p56 = scmp.ne.s32.totalorder %s39, %s55
    %p57 = scmp.eq.s32.totalorder %s17, 0
    %p58 = por %p56, %p57
    %s60 = sadd.s32 %s59, 1
    %p63 = scmp.eq.s32.totalorder %s11, 1
    %p64 = scmp.ne.s32.totalorder %s59, %s61
    %p65 = scmp.eq.s32.totalorder %s11, 0
    %p66 = por %p64, %p65
    %p67 = scmp.ne.s32.totalorder %s59, %s61
    %p68 = scmp.eq.s32.totalorder %s16, 1
    %p69 = por %p67, %p68
    %p70 = scmp.ne.s32.totalorder %s61, %s62
    %p71 = scmp.eq.s32.totalorder %s16, 0
    %p72 = por %p70, %p71
    %p73 = scmp.ne.s32.totalorder %s61, %s62
    %p74 = scmp.eq.s32.totalorder %s17, 1
    %p75 = por %p73, %p74
    %p77 = scmp.ne.s32.totalorder %s62, %s76
    %p78 = scmp.eq.s32.totalorder %s17, 0
    %p79 = por %p77, %p78
    %s81 = sadd.s32 %s80, 1
    %p84 = scmp.eq.s32.totalorder %s11, 1
    %p85 = scmp.ne.s32.totalorder %s80, %s82
    %p86 = scmp.eq.s32.totalorder %s11, 0
    %p87 = por %p85, %p86
    %p88 = scmp.ne.s32.totalorder %s80, %s82
    %p89 = scmp.eq.s32.totalorder %s16, 1
    %p90 = por %p88, %p89
    %p91 = scmp.ne.s32.totalorder %s82, %s83
    %p92 = scmp.eq.s32.totalorder %s16, 0
    %p93 = por %p91, %p92
    %p94 = scmp.ne.s32.totalorder %s82, %s83
    %p95 = scmp.eq.s32.totalorder %s17, 1
    %p96 = por %p94, %p95
    %p98 = scmp.ne.s32.totalorder %s83, %s97
    %p99 = scmp.eq.s32.totalorder %s17, 0
    %p100 = por %p98, %p99
    %s101 = ssub.s32 %s18, %s30
    %p102 = scmp.eq.s32.totalorder %s101, 0
    %s104 = sadd.s32 %s103, 1
    %s105 = scalar_select %p102, %s103, %s104
    %p108 = pneg %p102
    %p109 = scmp.eq.s32.totalorder %s11, 1
    %p110 = por %p108, %p109
    %p111 = scmp.ne.s32.totalorder %s103, %s106
    %p112 = scmp.eq.s32.totalorder %s11, 0
    %p113 = por %p111, %p112
    %p114 = scmp.ne.s32.totalorder %s103, %s106
    %p115 = scmp.eq.s32.totalorder %s16, 1
    %p116 = por %p114, %p115
    %p117 = scmp.ne.s32.totalorder %s106, %s107
    %p118 = scmp.eq.s32.totalorder %s16, 0
    %p119 = por %p117, %p118
    %p120 = scmp.ne.s32.totalorder %s106, %s107
    %p121 = scmp.eq.s32.totalorder %s17, 1
    %p122 = por %p120, %p121
    %p124 = scmp.ne.s32.totalorder %s107, %s123
    %p125 = scmp.eq.s32.totalorder %s17, 0
    %p126 = por %p124, %p125
    %s127 = ssub.s32 %s18, %s30
    %p128 = scmp.eq.s32.totalorder %s127, 0
    %s130 = sadd.s32 %s129, 1
    %s131 = scalar_select %p128, %s129, %s130
    %p134 = pneg %p128
    %p135 = scmp.eq.s32.totalorder %s11, 1
    %p136 = por %p134, %p135
    %p137 = scmp.ne.s32.totalorder %s129, %s132
    %p138 = scmp.eq.s32.totalorder %s11, 0
    %p139 = por %p137, %p138
    %p140 = scmp.ne.s32.totalorder %s129, %s132
    %p141 = scmp.eq.s32.totalorder %s16, 1
    %p142 = por %p140, %p141
    %p143 = scmp.ne.s32.totalorder %s132, %s133
    %p144 = scmp.eq.s32.totalorder %s16, 0
    %p145 = por %p143, %p144
    %p146 = scmp.ne.s32.totalorder %s132, %s133
    %p147 = scmp.eq.s32.totalorder %s17, 1
    %p148 = por %p146, %p147
    %p150 = scmp.ne.s32.totalorder %s133, %s149
    %p151 = scmp.eq.s32.totalorder %s17, 0
    %p152 = por %p150, %p151
    %p153 = scmp.le.s32.totalorder 1, %s11
    %p154 = scmp.lt.s32.totalorder %s11, 3
    %p155 = pnand %p153, %p154
    %p156 = pneg %p155
    // Predicated region
    $region9: #{group_forward.2} parent=5 // pred_check
      _
    $region10: #{group_forward.2} parent=5 // pred_check_branch
      %158 = sbr.rel (%p155) target = $region12
    $region11: #{group_forward.2} parent=5 // pred_region
      %s159 = ssub.s32 %s11, 1
      // Predicated region
      $region13: #{group_forward.2} parent=11 // pred_check
        %p160 = pneg %p72
      $region14: #{group_forward.2} parent=11 // pred_check_branch
        %162 = sbr.rel (%p160) target = $region16
      $region15: #{group_forward.2} parent=11 // pred_region
        _
      $region16: #{group_forward.2} parent=11 // pred_fallthru
        _
      // Predicated region
      $region17: #{group_forward.2} parent=11 // pred_check
        %p163 = pneg %p93
      $region18: #{group_forward.2} parent=11 // pred_check_branch
        %165 = sbr.rel (%p163) target = $region20
      $region19: #{group_forward.2} parent=11 // pred_region
        _
      $region20: #{group_forward.2} parent=11 // pred_fallthru
        _
    $region12: #{group_forward.2} parent=5 // pred_fallthru
      _
    %p166 = scmp.lt.s32.totalorder %s11, 2
    // Predicated region
    $region21: #{group_forward.2} parent=5 // pred_check
      %p167 = pneg %p166
    $region22: #{group_forward.2} parent=5 // pred_check_branch
      %169 = sbr.rel (%p167) target = $region24
    $region23: #{group_forward.2} parent=5 // pred_region
      // Predicated region
      $region25: #{group_forward.2} parent=23 // pred_check
        %p170 = pneg %p45
      $region26: #{group_forward.2} parent=23 // pred_check_branch
        %172 = sbr.rel (%p170) target = $region28
      $region27: #{group_forward.2} parent=23 // pred_region
        %s173 = smul.u32 4, %s19
        %p174 = scmp.lt.s32.totalorder %s18, 1
        %s175 = scalar_select %p174, %s18, 1
        %p176 = scmp.lt.s32.totalorder %s173, 3
        %s177 = scalar_select %p176, %s173, 3
        %s178 = smul.addr %s175, 4
        %s179 = sadd.s32 %s177, %s178
        %s180 = smul.addr %s179, 2
        %s181 = scalar_lea.vmem %s0, %s180
        %s182 = smul.u32 4, %s19
      $region28: #{group_forward.2} parent=23 // pred_fallthru
        _
    $region24: #{group_forward.2} parent=5 // pred_fallthru
      _
    %p183 = scmp.le.s32.totalorder 1, %s11
    %p184 = scmp.lt.s32.totalorder %s11, 3
    %p185 = pnand %p183, %p184
    %p186 = pneg %p185
    // Predicated region
    $region29: #{group_forward.2} parent=5 // pred_check
      _
    $region30: #{group_forward.2} parent=5 // pred_check_branch
      %188 = sbr.rel (%p185) target = $region32
    $region31: #{group_forward.2} parent=5 // pred_region
      %s189 = ssub.s32 %s11, 1
      %s190 = smul.u32 4, %s21
      %p191 = scmp.lt.s32.totalorder %s20, 1
      %s192 = scalar_select %p191, %s20, 1
      %p193 = scmp.lt.s32.totalorder %s190, 3
      %s194 = scalar_select %p193, %s190, 3
      %s195 = smul.addr %s192, 4
      %s196 = sadd.s32 %s194, %s195
      %s197 = smul.addr %s196, 2
      %s198 = scalar_lea.vmem %s0, %s197
      %p199 = pneg %p51
      %p200 = pneg %p48
      %p201 = pneg %p72
      %p202 = pneg %p69
      %p203 = pneg %p93
      %p204 = pneg %p90
      %p205 = pneg %p119
      %p206 = pneg %p116
      %p207 = scmp.lt.s32.totalorder %s20, 1
      %s208 = scalar_select %p207, %s20, 1
      %s209 = smul.addr %s208, 4
      %s210 = scalar_lea.vmem %s3, %s209
      %p211 = pneg %p145
      %p212 = pneg %p142
      %p213 = scmp.lt.s32.totalorder %s20, 1
      %s214 = scalar_select %p213, %s20, 1
      %s215 = smul.addr %s214, 4
      %s216 = scalar_lea.vmem %s4, %s215
      %s217 = smul.u32 4, %s21
      %p218 = scmp.lt.s32.totalorder %s20, 1
      %s219 = scalar_select %p218, %s20, 1
      %p220 = scmp.lt.s32.totalorder %s217, 3
      %s221 = scalar_select %p220, %s217, 3
      %s222 = smul.addr %s219, 4
      %s223 = sadd.s32 %s221, %s222
      %s224 = smul.addr %s223, 2
      %s225 = scalar_lea.vmem %s0, %s224
      %s226 = smul.u32 4, %s21
      %p227 = scmp.lt.s32.totalorder %s20, 1
      %s228 = scalar_select %p227, %s20, 1
      %s229 = smul.addr %s228, 4
      %s230 = scalar_lea.vmem %s3, %s229
      %p231 = scmp.lt.s32.totalorder %s20, 1
      %s232 = scalar_select %p231, %s20, 1
      %s233 = smul.addr %s232, 4
      %s234 = scalar_lea.vmem %s4, %s233
      %p236 = scmp.eq.s32.totalorder %s21, 0
      // Predicated region
      $region33: #{group_forward.2} parent=31 // pred_check
        %p237 = pneg %p236
      $region34: #{group_forward.2} parent=31 // pred_check_branch
        %239 = sbr.rel (%p237) target = $region36
      $region35: #{group_forward.2} parent=31 // pred_region
        %vm240 = vcmask 3072
        %241 = vst.msk [vmem:[%s230] sm:$0xf] %vm240, 0.0
        %242 = vst.msk [vmem:[%s234] sm:$0xf] %vm240, 0.0
      $region36: #{group_forward.2} parent=31 // pred_fallthru
        _
      %v243 = vld [vmem:[%s225] sm:$0xff]
      %v244 = vld [vmem:[%s1] sm:$0xf]
      %v245 = vld [vmem:[%s2] sm:$0xff]
      %247 = vset.pattern.permute.xlu0 0
      %248 = vperm.xlu0 %247, %v245
      %v249 = vpop.permute.xlu0 %248
      %252 = vst [vmem:[#allocation1] ss:$4 sm:$0xff] %v243
      %v253 = vld.sshfl [vmem:[#allocation1] sm:$0xff pattern:$0x73625140]
      %v254 = vld.sshfl [vmem:[#allocation1 + $0x8] sm:$0xff pattern:$0x73625140]
      %v255 = vld.sshfl [vmem:[#allocation1 + $0x10] sm:$0xff pattern:$0x73625140]
      %v256 = vld.sshfl [vmem:[#allocation1 + $0x18] sm:$0xff pattern:$0x73625140]
      %vm257 = vcmask 31744
      %v259 = vsel %vm257, %v244, 0
      %vm261 = vcmask 1041408
      %v262 = vsel %vm261, %v253, 0
      %v264 = vsel %vm261, %v254, 0
      %v266 = vsel %vm261, %v255, 0
      %v268 = vsel %vm261, %v256, 0
      %270 = vmatpush.bf16.msra.mxu0 0
      %271 = vmatpush.bf16.msra.mxu0 0
      %272 = vmatpush.bf16.msra.mxu0 0
      %273 = vmatpush.bf16.msra.mxu0 0
      %274 = vmatpush.bf16.msra.mxu0 0
      %275 = vmatpush.bf16.msra.mxu0 0
      %276 = vmatpush.bf16.msra.mxu0 0
      %277 = vmatpush.bf16.msra.mxu0 %v262
      %278 = vmatmul.bf16.gmra.mxu0 %v259
      %v279 = vpop.f32.mrf.mxu0
      %v280 = vadd.f32 %v249, %v279
      %v281 = vpop.f32.mrf.mxu0
      %282 = vdwg.mxu0
      %283 = vmatpush.bf16.msra.mxu0 0
      %284 = vmatpush.bf16.msra.mxu0 0
      %285 = vmatpush.bf16.msra.mxu0 0
      %286 = vmatpush.bf16.msra.mxu0 0
      %287 = vmatpush.bf16.msra.mxu0 0
      %288 = vmatpush.bf16.msra.mxu0 0
      %289 = vmatpush.bf16.msra.mxu0 0
      %290 = vmatpush.bf16.msra.mxu0 %v264
      %291 = vmatmul.bf16.gmra.mxu0 %v259
      %v292 = vpop.f32.mrf.mxu0
      %v293 = vadd.f32 %v249, %v292
      %v294 = vpop.f32.mrf.mxu0
      %295 = vdwg.mxu0
      %296 = vmatpush.bf16.msra.mxu0 0
      %297 = vmatpush.bf16.msra.mxu0 0
      %298 = vmatpush.bf16.msra.mxu0 0
      %299 = vmatpush.bf16.msra.mxu0 0
      %300 = vmatpush.bf16.msra.mxu0 0
      %301 = vmatpush.bf16.msra.mxu0 0
      %302 = vmatpush.bf16.msra.mxu0 0
      %303 = vmatpush.bf16.msra.mxu0 %v266
      %304 = vmatmul.bf16.gmra.mxu0 %v259
      %v305 = vpop.f32.mrf.mxu0
      %v306 = vadd.f32 %v249, %v305
      %v307 = vpop.f32.mrf.mxu0
      %308 = vdwg.mxu0
      %309 = vmatpush.bf16.msra.mxu0 0
      %310 = vmatpush.bf16.msra.mxu0 0
      %311 = vmatpush.bf16.msra.mxu0 0
      %312 = vmatpush.bf16.msra.mxu0 0
      %313 = vmatpush.bf16.msra.mxu0 0
      %314 = vmatpush.bf16.msra.mxu0 0
      %315 = vmatpush.bf16.msra.mxu0 0
      %316 = vmatpush.bf16.msra.mxu0 %v268
      %317 = vmatmul.bf16.gmra.mxu0 %v259
      %v318 = vpop.f32.mrf.mxu0
      %v319 = vadd.f32 %v249, %v318
      %v320 = vpop.f32.mrf.mxu0
      %321 = vdwg.mxu0
      %v326 = vrot.slane %v280, 4
      %v327 = vrot.slane %v293, 4
      %v328 = vrot.slane %v306, 4
      %v329 = vrot.slane %v319, 4
      %v334 = vmax.f32 %v280, %v326
      %v335 = vmax.f32 %v293, %v327
      %v336 = vmax.f32 %v306, %v328
      %v337 = vmax.f32 %v319, %v329
      %v338 = vld [vmem:[%s230] sm:$0xf]
      %vm339 = vcmask 1043456
      %v340 = vsel %vm339, %v334, 0.0
      %v341 = vsel %vm339, %v335, 0.0
      %v342 = vadd.f32 %v340, %v341
      %v343 = vsel %vm339, %v336, 0.0
      %v344 = vadd.f32 %v342, %v343
      %v345 = vsel %vm339, %v337, 0.0
      %v346 = vadd.f32 %v344, %v345
      %347 = vadd.xlane.f32.xlu0 %v346
      %v348 = vpop.xlane.xlu0 %347
      %v349 = vadd.f32 %v338, %v348
      %vm350 = vcmask 3072
      %351 = vst.msk [vmem:[%s230] sm:$0xf] %vm350, %v349
      %v352 = vld [vmem:[%s234] sm:$0xf]
      %v353 = vmul.f32 %v334, %v334
      %v354 = vmul.f32 %v335, %v335
      %v355 = vmul.f32 %v336, %v336
      %v356 = vmul.f32 %v337, %v337
      %v357 = vsel %vm339, %v353, 0.0
      %v358 = vsel %vm339, %v354, 0.0
      %v359 = vadd.f32 %v357, %v358
      %v360 = vsel %vm339, %v355, 0.0
      %v361 = vadd.f32 %v359, %v360
      %v362 = vsel %vm339, %v356, 0.0
      %v363 = vadd.f32 %v361, %v362
      %364 = vadd.xlane.f32.xlu0 %v363
      %v365 = vpop.xlane.xlu0 %364
      %v366 = vadd.f32 %v352, %v365
      %367 = vst.msk [vmem:[%s234] sm:$0xf] %vm350, %v366
      %p368 = scmp.lt.s32.totalorder %s20, 1
      %s369 = scalar_select %p368, %s20, 1
      %s370 = smul.addr %s369, 4
      %s371 = scalar_lea.vmem %s3, %s370
      %p372 = scmp.lt.s32.totalorder %s20, 1
      %s373 = scalar_select %p372, %s20, 1
      %s374 = smul.addr %s373, 4
      %s375 = scalar_lea.vmem %s4, %s374
      // Predicated region
      $region37: #{group_forward.2} parent=31 // pred_check
        %p376 = pneg %p116
      $region38: #{group_forward.2} parent=31 // pred_check_branch
        %378 = sbr.rel (%p376) target = $region40
      $region39: #{group_forward.2} parent=31 // pred_region
        _
      $region40: #{group_forward.2} parent=31 // pred_fallthru
        _
      // Predicated region
      $region41: #{group_forward.2} parent=31 // pred_check
        %p379 = pneg %p142
      $region42: #{group_forward.2} parent=31 // pred_check_branch
        %381 = sbr.rel (%p379) target = $region44
      $region43: #{group_forward.2} parent=31 // pred_region
        _
      $region44: #{group_forward.2} parent=31 // pred_fallthru
        _
    $region32: #{group_forward.2} parent=5 // pred_fallthru
      _
    %p382 = scmp.le.s32.totalorder 2, %s11
    // Predicated region
    $region45: #{group_forward.2} parent=5 // pred_check
      %p383 = pneg %p382
    $region46: #{group_forward.2} parent=5 // pred_check_branch
      %385 = sbr.rel (%p383) target = $region48
    $region47: #{group_forward.2} parent=5 // pred_region
      %s386 = ssub.s32 %s11, 2
      // Predicated region
      $region49: #{group_forward.2} parent=47 // pred_check
        %p387 = pneg %p122
      $region50: #{group_forward.2} parent=47 // pred_check_branch
        %389 = sbr.rel (%p387) target = $region52
      $region51: #{group_forward.2} parent=47 // pred_region
        %p390 = scmp.lt.s32.totalorder %s22, 1
        %s391 = scalar_select %p390, %s22, 1
        %s392 = smul.addr %s391, 4
        %s393 = scalar_lea.vmem %s3, %s392
      $region52: #{group_forward.2} parent=47 // pred_fallthru
        _
      // Predicated region
      $region53: #{group_forward.2} parent=47 // pred_check
        %p394 = pneg %p148
      $region54: #{group_forward.2} parent=47 // pred_check_branch
        %396 = sbr.rel (%p394) target = $region56
      $region55: #{group_forward.2} parent=47 // pred_region
        %p397 = scmp.lt.s32.totalorder %s22, 1
        %s398 = scalar_select %p397, %s22, 1
        %s399 = smul.addr %s398, 4
        %s400 = scalar_lea.vmem %s4, %s399
      $region56: #{group_forward.2} parent=47 // pred_fallthru
        _
    $region48: #{group_forward.2} parent=5 // pred_fallthru
      _
  $region6: #{group_forward.2} parent=0 // loop_footer
    %s15 = sadd.s32 1, %s11
  $region7: #{group_forward.2} parent=0 // loop_footer_branch
    %10 = sbr.rel target = $region3
  $region8: #{group_forward.2} parent=0 // loop_exit
    _

// kernel: group_forward.3
$region0: #{group_forward.3}
  #allocation0 [shape = 'u32[]', space=smem, size = 0x4, offset = 0x4, fixed_abs, tag = 'smem constant byte address 0x4 - core index']
  #allocation1 [shape = 'u32[72,128]{1,0:T(1,128)}', space=vmem, size = 0x9000, scoped, tag = 'internal scratch']
  #allocation2 [shape = 'bf16[4,512]{1,0:T(4,128)(2,1)}', space=vmem, size = 0x1000, scoped, tag = 'scratch operand']
  #allocation3 [shape = 'bf16[36,384]{1,0:T(8,128)(2,1)}', space=vmem, size = 0x7800, scoped, tag = 'scratch operand']
  %s0 = inlined_call_operand.vmem [shape: bf16[2,4,512], index: 0, kind: input, shape index: {}]
  %s1 = inlined_call_operand.vmem [shape: bf16[1,512], index: 1, kind: input, shape index: {}]
  %s2 = inlined_call_operand.vmem [shape: bf16[8,4], index: 2, kind: input, shape index: {}]
  %s3 = inlined_call_operand.vmem [shape: f32[8,1], index: 3, kind: input, shape index: {}]
  %s4 = inlined_call_operand.vmem [shape: f32[4,1], index: 4, kind: input, shape index: {}]
  %s5 = inlined_call_operand.vmem [shape: f32[4,1], index: 5, kind: input, shape index: {}]
  %s6 = inlined_call_operand.vmem [shape: bf16[16,36], index: 6, kind: input, shape index: {}]
  %s7 = inlined_call_operand.vmem [shape: f32[16,1], index: 7, kind: input, shape index: {}]
  %s8 = inlined_call_operand.vmem [shape: f32[2,8,384], index: 8, kind: output, shape index: {}]
  %s9 = sld [smem:[#allocation0]]
  $region65: #{group_forward.3} parent=0
    _
  %s11 = ssub.s32 1, %s9
  %s12 = scalar_select 0, %s11, %s9
  loop: start=0, step=1, limit=4
  $region2: #{group_forward.3} parent=0 // loop_pre_header
    _
  $region3: #{group_forward.3} parent=0 // loop_header
    %s14 = sphi 0, %s18
    %p15 = scmp.ge.s32.totalorder %s14, 4
    %s24 = sphi 0, %s26
    %s27 = sphi 0, %s24
    %s28 = sphi 0, %s27
    %s44 = sphi 0, %s28
    %s48 = sphi 0, %s48
    %s50 = sphi 0, %s48
    %s51 = sphi 0, %s50
    %s65 = sphi 0, %s51
    %s69 = sphi 0, %s69
    %s71 = sphi 0, %s69
    %s72 = sphi 0, %s71
    %s86 = sphi 0, %s72
    %s90 = sphi 0, %s90
    %s92 = sphi 0, %s90
    %s93 = sphi 0, %s92
    %s107 = sphi 0, %s93
    %s111 = sphi 0, %s111
    %s113 = sphi 0, %s111
    %s114 = sphi 0, %s113
    %s128 = sphi 0, %s114
    %s132 = sphi 0, %s132
    %s134 = sphi 0, %s132
    %s135 = sphi 0, %s134
    %s149 = sphi 0, %s135
    %s153 = sphi 0, %s153
    %s155 = sphi 0, %s153
    %s156 = sphi 0, %s155
    %s170 = sphi 0, %s156
    %s174 = sphi 0, %s174
    %s176 = sphi 0, %s174
    %s177 = sphi 0, %s176
    %s191 = sphi 0, %s177
    %s197 = sphi 0, %s199
    %s200 = sphi 0, %s197
    %s201 = sphi 0, %s200
    %s217 = sphi 0, %s201
  $region4: #{group_forward.3} parent=0 // loop_header_branch
    %17 = sbr.rel (%p15) target = $region8
  $region5: #{group_forward.3} parent=0 // loop_body
    %s19 = ssub.s32 %s14, 1
    %s20 = ssub.s32 %s14, 2
    %s21 = sadd.s32 %s14, 1
    %s22 = ssub.s32 %s14, %s21
    %p23 = scmp.eq.s32.totalorder %s22, 0
    %s25 = sadd.s32 %s24, 1
    %s26 = scalar_select %p23, %s24, %s25
    %p29 = pneg %p23
    %p30 = scmp.eq.s32.totalorder %s14, 1
    %p31 = por %p29, %p30
    %p32 = scmp.ne.s32.totalorder %s24, %s27
    %p33 = scmp.eq.s32.totalorder %s14, 0
    %p34 = por %p32, %p33
    %p35 = scmp.ne.s32.totalorder %s24, %s27
    %p36 = scmp.eq.s32.totalorder %s19, 1
    %p37 = por %p35, %p36
    %p38 = scmp.ne.s32.totalorder %s27, %s28
    %p39 = scmp.eq.s32.totalorder %s19, 0
    %p40 = por %p38, %p39
    %p41 = scmp.ne.s32.totalorder %s27, %s28
    %p42 = scmp.eq.s32.totalorder %s20, 1
    %p43 = por %p41, %p42
    %p45 = scmp.ne.s32.totalorder %s28, %s44
    %p46 = scmp.eq.s32.totalorder %s20, 0
    %p47 = por %p45, %p46
    %s49 = sadd.s32 %s48, 1
    %p52 = scmp.eq.s32.totalorder %s14, 1
    %p53 = scmp.ne.s32.totalorder %s48, %s50
    %p54 = scmp.eq.s32.totalorder %s14, 0
    %p55 = por %p53, %p54
    %p56 = scmp.ne.s32.totalorder %s48, %s50
    %p57 = scmp.eq.s32.totalorder %s19, 1
    %p58 = por %p56, %p57
    %p59 = scmp.ne.s32.totalorder %s50, %s51
    %p60 = scmp.eq.s32.totalorder %s19, 0
    %p61 = por %p59, %p60
    %p62 = scmp.ne.s32.totalorder %s50, %s51
    %p63 = scmp.eq.s32.totalorder %s20, 1
    %p64 = por %p62, %p63
    %p66 = scmp.ne.s32.totalorder %s51, %s65
    %p67 = scmp.eq.s32.totalorder %s20, 0
    %p68 = por %p66, %p67
    %s70 = sadd.s32 %s69, 1
    %p73 = scmp.eq.s32.totalorder %s14, 1
    %p74 = scmp.ne.s32.totalorder %s69, %s71
    %p75 = scmp.eq.s32.totalorder %s14, 0
    %p76 = por %p74, %p75
    %p77 = scmp.ne.s32.totalorder %s69, %s71
    %p78 = scmp.eq.s32.totalorder %s19, 1
    %p79 = por %p77, %p78
    %p80 = scmp.ne.s32.totalorder %s71, %s72
    %p81 = scmp.eq.s32.totalorder %s19, 0
    %p82 = por %p80, %p81
    %p83 = scmp.ne.s32.totalorder %s71, %s72
    %p84 = scmp.eq.s32.totalorder %s20, 1
    %p85 = por %p83, %p84
    %p87 = scmp.ne.s32.totalorder %s72, %s86
    %p88 = scmp.eq.s32.totalorder %s20, 0
    %p89 = por %p87, %p88
    %s91 = sadd.s32 %s90, 1
    %p94 = scmp.eq.s32.totalorder %s14, 1
    %p95 = scmp.ne.s32.totalorder %s90, %s92
    %p96 = scmp.eq.s32.totalorder %s14, 0
    %p97 = por %p95, %p96
    %p98 = scmp.ne.s32.totalorder %s90, %s92
    %p99 = scmp.eq.s32.totalorder %s19, 1
    %p100 = por %p98, %p99
    %p101 = scmp.ne.s32.totalorder %s92, %s93
    %p102 = scmp.eq.s32.totalorder %s19, 0
    %p103 = por %p101, %p102
    %p104 = scmp.ne.s32.totalorder %s92, %s93
    %p105 = scmp.eq.s32.totalorder %s20, 1
    %p106 = por %p104, %p105
    %p108 = scmp.ne.s32.totalorder %s93, %s107
    %p109 = scmp.eq.s32.totalorder %s20, 0
    %p110 = por %p108, %p109
    %s112 = sadd.s32 %s111, 1
    %p115 = scmp.eq.s32.totalorder %s14, 1
    %p116 = scmp.ne.s32.totalorder %s111, %s113
    %p117 = scmp.eq.s32.totalorder %s14, 0
    %p118 = por %p116, %p117
    %p119 = scmp.ne.s32.totalorder %s111, %s113
    %p120 = scmp.eq.s32.totalorder %s19, 1
    %p121 = por %p119, %p120
    %p122 = scmp.ne.s32.totalorder %s113, %s114
    %p123 = scmp.eq.s32.totalorder %s19, 0
    %p124 = por %p122, %p123
    %p125 = scmp.ne.s32.totalorder %s113, %s114
    %p126 = scmp.eq.s32.totalorder %s20, 1
    %p127 = por %p125, %p126
    %p129 = scmp.ne.s32.totalorder %s114, %s128
    %p130 = scmp.eq.s32.totalorder %s20, 0
    %p131 = por %p129, %p130
    %s133 = sadd.s32 %s132, 1
    %p136 = scmp.eq.s32.totalorder %s14, 1
    %p137 = scmp.ne.s32.totalorder %s132, %s134
    %p138 = scmp.eq.s32.totalorder %s14, 0
    %p139 = por %p137, %p138
    %p140 = scmp.ne.s32.totalorder %s132, %s134
    %p141 = scmp.eq.s32.totalorder %s19, 1
    %p142 = por %p140, %p141
    %p143 = scmp.ne.s32.totalorder %s134, %s135
    %p144 = scmp.eq.s32.totalorder %s19, 0
    %p145 = por %p143, %p144
    %p146 = scmp.ne.s32.totalorder %s134, %s135
    %p147 = scmp.eq.s32.totalorder %s20, 1
    %p148 = por %p146, %p147
    %p150 = scmp.ne.s32.totalorder %s135, %s149
    %p151 = scmp.eq.s32.totalorder %s20, 0
    %p152 = por %p150, %p151
    %s154 = sadd.s32 %s153, 1
    %p157 = scmp.eq.s32.totalorder %s14, 1
    %p158 = scmp.ne.s32.totalorder %s153, %s155
    %p159 = scmp.eq.s32.totalorder %s14, 0
    %p160 = por %p158, %p159
    %p161 = scmp.ne.s32.totalorder %s153, %s155
    %p162 = scmp.eq.s32.totalorder %s19, 1
    %p163 = por %p161, %p162
    %p164 = scmp.ne.s32.totalorder %s155, %s156
    %p165 = scmp.eq.s32.totalorder %s19, 0
    %p166 = por %p164, %p165
    %p167 = scmp.ne.s32.totalorder %s155, %s156
    %p168 = scmp.eq.s32.totalorder %s20, 1
    %p169 = por %p167, %p168
    %p171 = scmp.ne.s32.totalorder %s156, %s170
    %p172 = scmp.eq.s32.totalorder %s20, 0
    %p173 = por %p171, %p172
    %s175 = sadd.s32 %s174, 1
    %p178 = scmp.eq.s32.totalorder %s14, 1
    %p179 = scmp.ne.s32.totalorder %s174, %s176
    %p180 = scmp.eq.s32.totalorder %s14, 0
    %p181 = por %p179, %p180
    %p182 = scmp.ne.s32.totalorder %s174, %s176
    %p183 = scmp.eq.s32.totalorder %s19, 1
    %p184 = por %p182, %p183
    %p185 = scmp.ne.s32.totalorder %s176, %s177
    %p186 = scmp.eq.s32.totalorder %s19, 0
    %p187 = por %p185, %p186
    %p188 = scmp.ne.s32.totalorder %s176, %s177
    %p189 = scmp.eq.s32.totalorder %s20, 1
    %p190 = por %p188, %p189
    %p192 = scmp.ne.s32.totalorder %s177, %s191
    %p193 = scmp.eq.s32.totalorder %s20, 0
    %p194 = por %p192, %p193
    %s195 = ssub.s32 %s14, %s21
    %p196 = scmp.eq.s32.totalorder %s195, 0
    %s198 = sadd.s32 %s197, 1
    %s199 = scalar_select %p196, %s197, %s198
    %p202 = pneg %p196
    %p203 = scmp.eq.s32.totalorder %s14, 1
    %p204 = por %p202, %p203
    %p205 = scmp.ne.s32.totalorder %s197, %s200
    %p206 = scmp.eq.s32.totalorder %s14, 0
    %p207 = por %p205, %p206
    %p208 = scmp.ne.s32.totalorder %s197, %s200
    %p209 = scmp.eq.s32.totalorder %s19, 1
    %p210 = por %p208, %p209
    %p211 = scmp.ne.s32.totalorder %s200, %s201
    %p212 = scmp.eq.s32.totalorder %s19, 0
    %p213 = por %p211, %p212
    %p214 = scmp.ne.s32.totalorder %s200, %s201
    %p215 = scmp.eq.s32.totalorder %s20, 1
    %p216 = por %p214, %p215
    %p218 = scmp.ne.s32.totalorder %s201, %s217
    %p219 = scmp.eq.s32.totalorder %s20, 0
    %p220 = por %p218, %p219
    %p221 = scmp.le.s32.totalorder 1, %s14
    %p222 = scmp.lt.s32.totalorder %s14, 3
    %p223 = pnand %p221, %p222
    %p224 = pneg %p223
    // Predicated region
    $region9: #{group_forward.3} parent=5 // pred_check
      _
    $region10: #{group_forward.3} parent=5 // pred_check_branch
      %226 = sbr.rel (%p223) target = $region12
    $region11: #{group_forward.3} parent=5 // pred_region
      %s227 = ssub.s32 %s14, 1
      // Predicated region
      $region13: #{group_forward.3} parent=11 // pred_check
        %p228 = pneg %p61
      $region14: #{group_forward.3} parent=11 // pred_check_branch
        %230 = sbr.rel (%p228) target = $region16
      $region15: #{group_forward.3} parent=11 // pred_region
        _
      $region16: #{group_forward.3} parent=11 // pred_fallthru
        _
      // Predicated region
      $region17: #{group_forward.3} parent=11 // pred_check
        %p231 = pneg %p82
      $region18: #{group_forward.3} parent=11 // pred_check_branch
        %233 = sbr.rel (%p231) target = $region20
      $region19: #{group_forward.3} parent=11 // pred_region
        _
      $region20: #{group_forward.3} parent=11 // pred_fallthru
        _
      // Predicated region
      $region21: #{group_forward.3} parent=11 // pred_check
        %p234 = pneg %p103
      $region22: #{group_forward.3} parent=11 // pred_check_branch
        %236 = sbr.rel (%p234) target = $region24
      $region23: #{group_forward.3} parent=11 // pred_region
        _
      $region24: #{group_forward.3} parent=11 // pred_fallthru
        _
      // Predicated region
      $region25: #{group_forward.3} parent=11 // pred_check
        %p237 = pneg %p124
      $region26: #{group_forward.3} parent=11 // pred_check_branch
        %239 = sbr.rel (%p237) target = $region28
      $region27: #{group_forward.3} parent=11 // pred_region
        _
      $region28: #{group_forward.3} parent=11 // pred_fallthru
        _
      // Predicated region
      $region29: #{group_forward.3} parent=11 // pred_check
        %p240 = pneg %p145
      $region30: #{group_forward.3} parent=11 // pred_check_branch
        %242 = sbr.rel (%p240) target = $region32
      $region31: #{group_forward.3} parent=11 // pred_region
        _
      $region32: #{group_forward.3} parent=11 // pred_fallthru
        _
      // Predicated region
      $region33: #{group_forward.3} parent=11 // pred_check
        %p243 = pneg %p166
      $region34: #{group_forward.3} parent=11 // pred_check_branch
        %245 = sbr.rel (%p243) target = $region36
      $region35: #{group_forward.3} parent=11 // pred_region
        _
      $region36: #{group_forward.3} parent=11 // pred_fallthru
        _
      // Predicated region
      $region37: #{group_forward.3} parent=11 // pred_check
        %p246 = pneg %p187
      $region38: #{group_forward.3} parent=11 // pred_check_branch
        %248 = sbr.rel (%p246) target = $region40
      $region39: #{group_forward.3} parent=11 // pred_region
        _
      $region40: #{group_forward.3} parent=11 // pred_fallthru
        _
    $region12: #{group_forward.3} parent=5 // pred_fallthru
      _
    %p249 = scmp.lt.s32.totalorder %s14, 2
    // Predicated region
    $region41: #{group_forward.3} parent=5 // pred_check
      %p250 = pneg %p249
    $region42: #{group_forward.3} parent=5 // pred_check_branch
      %252 = sbr.rel (%p250) target = $region44
    $region43: #{group_forward.3} parent=5 // pred_region
      // Predicated region
      $region45: #{group_forward.3} parent=43 // pred_check
        %p253 = pneg %p34
      $region46: #{group_forward.3} parent=43 // pred_check_branch
        %255 = sbr.rel (%p253) target = $region48
      $region47: #{group_forward.3} parent=43 // pred_region
        %p256 = scmp.lt.s32.totalorder %s14, 1
        %s257 = scalar_select %p256, %s14, 1
        %s258 = smul.addr %s257, 4
        %s259 = smul.addr %s258, 2
        %s260 = scalar_lea.vmem %s0, %s259
      $region48: #{group_forward.3} parent=43 // pred_fallthru
        _
    $region44: #{group_forward.3} parent=5 // pred_fallthru
      _
    %p261 = scmp.le.s32.totalorder 1, %s14
    %p262 = scmp.lt.s32.totalorder %s14, 3
    %p263 = pnand %p261, %p262
    %p264 = pneg %p263
    // Predicated region
    $region49: #{group_forward.3} parent=5 // pred_check
      _
    $region50: #{group_forward.3} parent=5 // pred_check_branch
      %266 = sbr.rel (%p263) target = $region52
    $region51: #{group_forward.3} parent=5 // pred_region
      %s267 = ssub.s32 %s14, 1
      %p268 = scmp.lt.s32.totalorder %s19, 1
      %s269 = scalar_select %p268, %s19, 1
      %s270 = smul.addr %s269, 4
      %s271 = smul.addr %s270, 2
      %s272 = scalar_lea.vmem %s0, %s271
      %p273 = pneg %p40
      %p274 = pneg %p37
      %p275 = pneg %p61
      %p276 = pneg %p58
      %p277 = pneg %p82
      %p278 = pneg %p79
      %p279 = pneg %p103
      %p280 = pneg %p100
      %p281 = pneg %p124
      %p282 = pneg %p121
      %p283 = pneg %p145
      %p284 = pneg %p142
      %p285 = pneg %p166
      %p286 = pneg %p163
      %p287 = pneg %p187
      %p288 = pneg %p184
      %p289 = pneg %p213
      %p290 = pneg %p210
      %p291 = scmp.lt.s32.totalorder %s19, 1
      %s292 = scalar_select %p291, %s19, 1
      %s293 = smul.addr %s292, 3
      %s294 = smul.addr %s293, 8
      %s295 = scalar_lea.vmem %s8, %s294
      %p296 = scmp.lt.s32.totalorder %s19, 1
      %s297 = scalar_select %p296, %s19, 1
      %s298 = smul.addr %s297, 4
      %s299 = smul.addr %s298, 2
      %s300 = scalar_lea.vmem %s0, %s299
      %p301 = scmp.lt.s32.totalorder %s19, 1
      %s302 = scalar_select %p301, %s19, 1
      %s303 = smul.addr %s302, 3
      %s304 = smul.addr %s303, 8
      %s305 = scalar_lea.vmem %s8, %s304
      %v307 = vld [vmem:[%s300] sm:$0xff]
      %v308 = vld [vmem:[%s2] sm:$0xf]
      %v309 = vld [vmem:[%s3] sm:$0xff]
      %311 = vset.pattern.permute.xlu0 0
      %312 = vperm.xlu0 %311, %v309
      %v313 = vpop.permute.xlu0 %312
      %316 = vst [vmem:[#allocation1] ss:$4 sm:$0xff] %v307
      %v317 = vld.sshfl [vmem:[#allocation1] sm:$0xff pattern:$0x73625140]
      %v318 = vld.sshfl [vmem:[#allocation1 + $0x8] sm:$0xff pattern:$0x73625140]
      %v319 = vld.sshfl [vmem:[#allocation1 + $0x10] sm:$0xff pattern:$0x73625140]
      %v320 = vld.sshfl [vmem:[#allocation1 + $0x18] sm:$0xff pattern:$0x73625140]
      %vm321 = vcmask 31744
      %v323 = vsel %vm321, %v308, 0
      %vm325 = vcmask 1041408
      %v326 = vsel %vm325, %v317, 0
      %v328 = vsel %vm325, %v318, 0
      %v330 = vsel %vm325, %v319, 0
      %v332 = vsel %vm325, %v320, 0
      %334 = vmatpush.bf16.msra.mxu0 0
      %335 = vmatpush.bf16.msra.mxu0 0
      %336 = vmatpush.bf16.msra.mxu0 0
      %337 = vmatpush.bf16.msra.mxu0 0
      %338 = vmatpush.bf16.msra.mxu0 0
      %339 = vmatpush.bf16.msra.mxu0 0
      %340 = vmatpush.bf16.msra.mxu0 0
      %341 = vmatpush.bf16.msra.mxu0 %v326
      %342 = vmatmul.bf16.gmra.mxu0 %v323
      %v343 = vpop.f32.mrf.mxu0
      %v344 = vadd.f32 %v313, %v343
      %v345 = vpop.f32.mrf.mxu0
      %346 = vdwg.mxu0
      %347 = vmatpush.bf16.msra.mxu0 0
      %348 = vmatpush.bf16.msra.mxu0 0
      %349 = vmatpush.bf16.msra.mxu0 0
      %350 = vmatpush.bf16.msra.mxu0 0
      %351 = vmatpush.bf16.msra.mxu0 0
      %352 = vmatpush.bf16.msra.mxu0 0
      %353 = vmatpush.bf16.msra.mxu0 0
      %354 = vmatpush.bf16.msra.mxu0 %v328
      %355 = vmatmul.bf16.gmra.mxu0 %v323
      %v356 = vpop.f32.mrf.mxu0
      %v357 = vadd.f32 %v313, %v356
      %v358 = vpop.f32.mrf.mxu0
      %359 = vdwg.mxu0
      %360 = vmatpush.bf16.msra.mxu0 0
      %361 = vmatpush.bf16.msra.mxu0 0
      %362 = vmatpush.bf16.msra.mxu0 0
      %363 = vmatpush.bf16.msra.mxu0 0
      %364 = vmatpush.bf16.msra.mxu0 0
      %365 = vmatpush.bf16.msra.mxu0 0
      %366 = vmatpush.bf16.msra.mxu0 0
      %367 = vmatpush.bf16.msra.mxu0 %v330
      %368 = vmatmul.bf16.gmra.mxu0 %v323
      %v369 = vpop.f32.mrf.mxu0
      %v370 = vadd.f32 %v313, %v369
      %v371 = vpop.f32.mrf.mxu0
      %372 = vdwg.mxu0
      %373 = vmatpush.bf16.msra.mxu0 0
      %374 = vmatpush.bf16.msra.mxu0 0
      %375 = vmatpush.bf16.msra.mxu0 0
      %376 = vmatpush.bf16.msra.mxu0 0
      %377 = vmatpush.bf16.msra.mxu0 0
      %378 = vmatpush.bf16.msra.mxu0 0
      %379 = vmatpush.bf16.msra.mxu0 0
      %380 = vmatpush.bf16.msra.mxu0 %v332
      %381 = vmatmul.bf16.gmra.mxu0 %v323
      %v382 = vpop.f32.mrf.mxu0
      %v383 = vadd.f32 %v313, %v382
      %v384 = vpop.f32.mrf.mxu0
      %385 = vdwg.mxu0
      %v390 = vrot.slane %v344, 4
      %v391 = vrot.slane %v357, 4
      %v392 = vrot.slane %v370, 4
      %v393 = vrot.slane %v383, 4
      %v398 = vmax.f32 %v344, %v390
      %v399 = vmax.f32 %v357, %v391
      %v400 = vmax.f32 %v370, %v392
      %v401 = vmax.f32 %v383, %v393
      %v402 = vld [vmem:[%s4] sm:$0xf]
      %404 = vset.pattern.permute.xlu0 0
      %405 = vperm.xlu0 %404, %v402
      %v406 = vpop.permute.xlu0 %405
      %v408 = vmul.f32 %v406, %v398
      %v409 = vmul.f32 %v406, %v399
      %v410 = vmul.f32 %v406, %v400
      %v411 = vmul.f32 %v406, %v401
      %v412 = vld [vmem:[%s5] sm:$0xf]
      %414 = vset.pattern.permute.xlu0 0
      %415 = vperm.xlu0 %414, %v412
      %v416 = vpop.permute.xlu0 %415
      %v418 = vadd.f32 %v408, %v416
      %v419 = vadd.f32 %v409, %v416
      %v420 = vadd.f32 %v410, %v416
      %v421 = vadd.f32 %v411, %v416
      %v422 = vld [vmem:[%s1] sm:$0xf]
      %v423 = vunpack.c.l.bf16 %v422
      %v425 = vperm.slane %v423, 0
      %v426 = vperm.slane %v423, 2
      %v427 = vperm.slane %v423, 4
      %v428 = vperm.slane %v423, 6
      %v433 = vperm.slane %v425, 0
      %v434 = vperm.slane %v426, 0
      %v435 = vperm.slane %v427, 0
      %v436 = vperm.slane %v428, 0
      %v437 = vmul.f32 %v418, %v433
      %v438 = vmul.f32 %v419, %v434
      %v439 = vmul.f32 %v420, %v435
      %v440 = vmul.f32 %v421, %v436
      %v441 = vpack.c.bf16 %v438, %v437
      %v442 = vpack.c.bf16 %v440, %v439
      %v445 = vrot.slane %v441, 2
      %v446 = vrot.slane %v442, 4
      %v447 = vrot.slane %v442, 6
      %v450 = vsel %vm325, %v441, %v445
      %vm451 = vcmask 1045508
      %v454 = vsel %vm451, %v446, %v447
      %vm455 = vcmask 1043456
      %v456 = vsel %vm455, %v450, %v454
      %458 = vst [vmem:[#allocation2] sm:$0xff] %v456
      %v459 = vld [vmem:[#allocation2] sm:$0x3f]
      %461 = vst [vmem:[#allocation1] ss:$2 sm:$0xff] %v459
      %v462 = vld.sshfl [vmem:[#allocation1] sm:$0xff pattern:$0x75643120]
      %v463 = vld.sshfl [vmem:[#allocation1 + $0x8] sm:$0xff pattern:$0x75643120]
      %466 = vst [vmem:[#allocation3] sm:$0x33] %v462
      %467 = vst [vmem:[#allocation3 + $0x8] sm:$0x3] %v463
      %v468 = vld [vmem:[#allocation2] sm:$0xff]
      %s470 = scalar_lea.vmem [#allocation1], 1
      %471 = vst [vmem:[%s470] ss:$2 sm:$0xff] %v468
      %v472 = vld.sshfl [vmem:[#allocation1] sm:$0xff pattern:$0x75643120]
      %v474 = vld.sshfl [vmem:[#allocation1 + $0x8] sm:$0xff pattern:$0x75643120]
      %476 = vrot.lane.b32.xlu0 %v472, 127
      %v477 = vpop.permute.xlu0 %476
      %478 = vrot.lane.b32.xlu0 %v474, 127
      %v479 = vpop.permute.xlu0 %478
      %v480 = vrot.slane %v477, 4
      %v481 = vrot.slane %v479, 4
      %vm482 = vcmask 1043456
      %v483 = vsel %vm482, %v480, %v481
      %vm484 = vcmask 1039360
      %v485 = vsel %vm484, %v477, %v483
      %v486 = vsel %vm484, %v479, %v481
      %489 = vst [vmem:[#allocation3] sm:$0xcc] %v485
      %490 = vst [vmem:[#allocation3 + $0x8] sm:$0xc] %v486
      %v491 = vld [vmem:[#allocation2] sm:$0xff]
      %493 = vst [vmem:[#allocation1] ss:$2 sm:$0xff] %v491
      %v494 = vld.sshfl [vmem:[#allocation1] sm:$0xff pattern:$0x75643120]
      %v496 = vld.sshfl [vmem:[#allocation1 + $0x8] sm:$0xff pattern:$0x75643120]
      %498 = vrot.lane.b32.xlu0 %v494, 126
      %v499 = vpop.permute.xlu0 %498
      %500 = vrot.lane.b32.xlu0 %v496, 126
      %v501 = vpop.permute.xlu0 %500
      %v502 = vrot.slane %v499, 4
      %v503 = vrot.slane %v501, 4
      %v504 = vsel %vm482, %v502, %v503
      %vm505 = vcmask 1031168
      %v506 = vsel %vm505, %v499, %v504
      %v507 = vsel %vm505, %v501, %v503
      %510 = vst [vmem:[#allocation3 + $0xc] sm:$0x33] %v506
      %511 = vst [vmem:[#allocation3 + $0x14] sm:$0x3] %v507
      %v512 = vld [vmem:[#allocation2] sm:$0xff]
      %s514 = scalar_lea.vmem [#allocation1], 1
      %515 = vst [vmem:[%s514] ss:$2 sm:$0xff] %v512
      %v516 = vld.sshfl [vmem:[#allocation1] sm:$0xff pattern:$0x75643120]
      %v518 = vld.sshfl [vmem:[#allocation1 + $0x8] sm:$0xff pattern:$0x75643120]
      %520 = vrot.lane.b32.xlu0 %v516, 110
      %v521 = vpop.permute.xlu0 %520
      %522 = vrot.lane.b32.xlu0 %v518, 110
      %v523 = vpop.permute.xlu0 %522
      %v524 = vrot.slane %v521, 4
      %v525 = vrot.slane %v523, 4
      %v526 = vsel %vm482, %v524, %v525
      %vm527 = vcmask 900096
      %v528 = vsel %vm527, %v521, %v526
      %v529 = vsel %vm527, %v523, %v525
      %532 = vst [vmem:[#allocation3 + $0xc] sm:$0xcc] %v528
      %533 = vst [vmem:[#allocation3 + $0x14] sm:$0xc] %v529
      %v534 = vld [vmem:[#allocation2] sm:$0xff]
      %536 = vst [vmem:[#allocation1] ss:$2 sm:$0xff] %v534
      %v537 = vld.sshfl [vmem:[#allocation1] sm:$0xff pattern:$0x75643120]
      %v539 = vld.sshfl [vmem:[#allocation1 + $0x8] sm:$0xff pattern:$0x75643120]
      %541 = vrot.lane.b32.xlu0 %v537, 109
      %v542 = vpop.permute.xlu0 %541
      %543 = vrot.lane.b32.xlu0 %v539, 109
      %v544 = vpop.permute.xlu0 %543
      %v545 = vrot.slane %v542, 4
      %v546 = vrot.slane %v544, 4
      %v547 = vsel %vm482, %v545, %v546
      %vm548 = vcmask 891904
      %v549 = vsel %vm548, %v542, %v547
      %v550 = vsel %vm548, %v544, %v546
      %553 = vst [vmem:[#allocation3 + $0x18] sm:$0x33] %v549
      %554 = vst [vmem:[#allocation3 + $0x20] sm:$0x3] %v550
      %v555 = vld [vmem:[#allocation2] sm:$0xff]
      %s557 = scalar_lea.vmem [#allocation1], 1
      %558 = vst [vmem:[%s557] ss:$2 sm:$0xff] %v555
      %v559 = vld.sshfl [vmem:[#allocation1] sm:$0xff pattern:$0x75643120]
      %v561 = vld.sshfl [vmem:[#allocation1 + $0x8] sm:$0xff pattern:$0x75643120]
      %563 = vrot.lane.b32.xlu0 %v559, 108
      %v564 = vpop.permute.xlu0 %563
      %565 = vrot.lane.b32.xlu0 %v561, 108
      %v566 = vpop.permute.xlu0 %565
      %v567 = vrot.slane %v564, 4
      %v568 = vrot.slane %v566, 4
      %v569 = vsel %vm482, %v567, %v568
      %vm570 = vcmask 883712
      %v571 = vsel %vm570, %v564, %v569
      %v572 = vsel %vm570, %v566, %v568
      %575 = vst [vmem:[#allocation3 + $0x18] sm:$0xcc] %v571
      %576 = vst [vmem:[#allocation3 + $0x20] sm:$0xc] %v572
      %v577 = vld [vmem:[#allocation2] sm:$0xff]
      %579 = vst [vmem:[#allocation1] ss:$2 sm:$0xff] %v577
      %v580 = vld.sshfl [vmem:[#allocation1] sm:$0xff pattern:$0x75643120]
      %v582 = vld.sshfl [vmem:[#allocation1 + $0x8] sm:$0xff pattern:$0x75643120]
      %584 = vrot.lane.b32.xlu0 %v580, 92
      %v585 = vpop.permute.xlu0 %584
      %586 = vrot.lane.b32.xlu0 %v582, 92
      %v587 = vpop.permute.xlu0 %586
      %v588 = vrot.slane %v585, 4
      %v589 = vrot.slane %v587, 4
      %v590 = vsel %vm482, %v588, %v589
      %vm591 = vcmask 752640
      %v592 = vsel %vm591, %v585, %v590
      %v593 = vsel %vm591, %v587, %v589
      %596 = vst [vmem:[#allocation3 + $0x24] sm:$0x33] %v592
      %597 = vst [vmem:[#allocation3 + $0x2c] sm:$0x3] %v593
      %v598 = vld [vmem:[#allocation2] sm:$0xff]
      %s600 = scalar_lea.vmem [#allocation1], 1
      %601 = vst [vmem:[%s600] ss:$2 sm:$0xff] %v598
      %v602 = vld.sshfl [vmem:[#allocation1] sm:$0xff pattern:$0x75643120]
      %v604 = vld.sshfl [vmem:[#allocation1 + $0x8] sm:$0xff pattern:$0x75643120]
      %606 = vrot.lane.b32.xlu0 %v602, 91
      %v607 = vpop.permute.xlu0 %606
      %608 = vrot.lane.b32.xlu0 %v604, 91
      %v609 = vpop.permute.xlu0 %608
      %v610 = vrot.slane %v607, 4
      %v611 = vrot.slane %v609, 4
      %v612 = vsel %vm482, %v610, %v611
      %vm613 = vcmask 744448
      %v614 = vsel %vm613, %v607, %v612
      %v615 = vsel %vm613, %v609, %v611
      %618 = vst [vmem:[#allocation3 + $0x24] sm:$0xcc] %v614
      %619 = vst [vmem:[#allocation3 + $0x2c] sm:$0xc] %v615
      %v620 = vld [vmem:[#allocation2] sm:$0xff]
      %622 = vst [vmem:[#allocation1] ss:$2 sm:$0xff] %v620
      %v623 = vld.sshfl [vmem:[#allocation1] sm:$0xff pattern:$0x75643120]
      %v625 = vld.sshfl [vmem:[#allocation1 + $0x8] sm:$0xff pattern:$0x75643120]
      %627 = vrot.lane.b32.xlu0 %v623, 90
      %v628 = vpop.permute.xlu0 %627
      %629 = vrot.lane.b32.xlu0 %v625, 90
      %v630 = vpop.permute.xlu0 %629
      %v631 = vrot.slane %v628, 4
      %v632 = vrot.slane %v630, 4
      %v633 = vsel %vm482, %v631, %v632
      %vm634 = vcmask 736256
      %v635 = vsel %vm634, %v628, %v633
      %v636 = vsel %vm634, %v630, %v632
      %639 = vst [vmem:[#allocation3 + $0x30] sm:$0x33] %v635
      %640 = vst [vmem:[#allocation3 + $0x38] sm:$0x3] %v636
      %v641 = vld [vmem:[%s6] sm:$0xf]
      %v642 = vld [vmem:[%s6 + $0x4] sm:$0xf]
      %v643 = vld [vmem:[#allocation3] sm:$0xff]
      %v644 = vld [vmem:[#allocation3 + $0x8] sm:$0xf]
      %v645 = vld [vmem:[#allocation3 + $0xc] sm:$0xff]
      %v646 = vld [vmem:[#allocation3 + $0x14] sm:$0xf]
      %v647 = vld [vmem:[#allocation3 + $0x18] sm:$0xff]
      %v648 = vld [vmem:[#allocation3 + $0x20] sm:$0xf]
      %v649 = vld [vmem:[#allocation3 + $0x24] sm:$0xff]
      %v650 = vld [vmem:[#allocation3 + $0x2c] sm:$0xf]
      %v651 = vld [vmem:[#allocation3 + $0x30] sm:$0x33]
      %v652 = vld [vmem:[#allocation3 + $0x38] sm:$0x3]
      %v653 = vld [vmem:[%s7] sm:$0xff]
      %v654 = vld [vmem:[%s7 + $0x8] sm:$0xff]
      %656 = vset.pattern.permute.xlu0 0
      %657 = vperm.xlu0 %656, %v653
      %v658 = vpop.permute.xlu0 %657
      %661 = vset.pattern.permute.xlu0 0
      %662 = vperm.xlu0 %661, %v654
      %v663 = vpop.permute.xlu0 %662
      %v667 = vunpack.c.l.b16 %v641
      %v668 = vunpack.c.l.b16 %v642
      %v669 = vpack.c.b16 %v668, %v667
      %v680 = vunpack.c.l.b16 %v643
      %v681 = vunpack.c.h.b16 %v643
      %v682 = vunpack.c.l.b16 %v644
      %v683 = vunpack.c.l.b16 %v645
      %v684 = vunpack.c.h.b16 %v645
      %v685 = vunpack.c.l.b16 %v646
      %v686 = vunpack.c.l.b16 %v647
      %v687 = vunpack.c.h.b16 %v647
      %v688 = vunpack.c.l.b16 %v648
      %v689 = vunpack.c.l.b16 %v649
      %v690 = vunpack.c.h.b16 %v649
      %v691 = vunpack.c.l.b16 %v650
      %v692 = vunpack.c.l.b16 %v651
      %v693 = vunpack.c.h.b16 %v651
      %v694 = vunpack.c.l.b16 %v652
      %v695 = vpack.c.b16 %v683, %v680
      %v696 = vpack.c.b16 %v684, %v681
      %v697 = vpack.c.b16 %v685, %v682
      %v698 = vpack.c.b16 %v689, %v686
      %v699 = vpack.c.b16 %v690, %v687
      %v700 = vpack.c.b16 %v691, %v688
      %v701 = vpack.c.b16 %v692, %v692
      %v702 = vpack.c.b16 %v693, %v693
      %v703 = vpack.c.b16 %v694, %v694
      %vm710 = vcmask 293888
      %v712 = vsel %vm710, %v669, 0
      %v715 = vsel %vm325, %v701, 0
      %v718 = vsel %vm325, %v702, 0
      %v721 = vsel %vm325, %v703, 0
      %723 = vmatpush.bf16.msra.mxu0 0
      %724 = vmatpush.bf16.msra.mxu0 0
      %725 = vmatpush.bf16.msra.mxu0 0
      %726 = vmatpush.bf16.msra.mxu0 0
      %727 = vmatpush.bf16.msra.mxu0 0
      %728 = vmatpush.bf16.msra.mxu0 %v715
      %729 = vmatpush.bf16.msra.mxu0 %v698
      %730 = vmatpush.bf16.msra.mxu0 %v695
      %731 = vmatmul.bf16.gmra.mxu0 %v712
      %v732 = vpop.f32.mrf.mxu0
      %v733 = vadd.f32 %v658, %v732
      %v734 = vpop.f32.mrf.mxu0
      %v735 = vadd.f32 %v663, %v734
      %736 = vdwg.mxu0
      %737 = vmatpush.bf16.msra.mxu0 0
      %738 = vmatpush.bf16.msra.mxu0 0
      %739 = vmatpush.bf16.msra.mxu0 0
      %740 = vmatpush.bf16.msra.mxu0 0
      %741 = vmatpush.bf16.msra.mxu0 0
      %742 = vmatpush.bf16.msra.mxu0 %v718
      %743 = vmatpush.bf16.msra.mxu0 %v699
      %744 = vmatpush.bf16.msra.mxu0 %v696
      %745 = vmatmul.bf16.gmra.mxu0 %v712
      %v746 = vpop.f32.mrf.mxu0
      %v747 = vadd.f32 %v658, %v746
      %v748 = vpop.f32.mrf.mxu0
      %v749 = vadd.f32 %v663, %v748
      %750 = vdwg.mxu0
      %751 = vmatpush.bf16.msra.mxu0 0
      %752 = vmatpush.bf16.msra.mxu0 0
      %753 = vmatpush.bf16.msra.mxu0 0
      %754 = vmatpush.bf16.msra.mxu0 0
      %755 = vmatpush.bf16.msra.mxu0 0
      %756 = vmatpush.bf16.msra.mxu0 %v721
      %757 = vmatpush.bf16.msra.mxu0 %v700
      %758 = vmatpush.bf16.msra.mxu0 %v697
      %759 = vmatmul.bf16.gmra.mxu0 %v712
      %v760 = vpop.f32.mrf.mxu0
      %v761 = vadd.f32 %v658, %v760
      %v762 = vpop.f32.mrf.mxu0
      %v763 = vadd.f32 %v663, %v762
      %764 = vdwg.mxu0
      %v765 = vmax.f32 %v733, %v735
      %v766 = vmax.f32 %v747, %v749
      %v767 = vmax.f32 %v761, %v763
      %768 = vst [vmem:[%s305] sm:$0xff] %v765
      %769 = vst [vmem:[%s305 + $0x8] sm:$0xff] %v766
      %770 = vst [vmem:[%s305 + $0x10] sm:$0xff] %v767
      %p771 = scmp.lt.s32.totalorder %s19, 1
      %s772 = scalar_select %p771, %s19, 1
      %s773 = smul.addr %s772, 3
      %s774 = smul.addr %s773, 8
      %s775 = scalar_lea.vmem %s8, %s774
      // Predicated region
      $region53: #{group_forward.3} parent=51 // pred_check
        %p776 = pneg %p210
      $region54: #{group_forward.3} parent=51 // pred_check_branch
        %778 = sbr.rel (%p776) target = $region56
      $region55: #{group_forward.3} parent=51 // pred_region
        _
      $region56: #{group_forward.3} parent=51 // pred_fallthru
        _
    $region52: #{group_forward.3} parent=5 // pred_fallthru
      _
    %p779 = scmp.le.s32.totalorder 2, %s14
    // Predicated region
    $region57: #{group_forward.3} parent=5 // pred_check
      %p780 = pneg %p779
    $region58: #{group_forward.3} parent=5 // pred_check_branch
      %782 = sbr.rel (%p780) target = $region60
    $region59: #{group_forward.3} parent=5 // pred_region
      %s783 = ssub.s32 %s14, 2
      // Predicated region
      $region61: #{group_forward.3} parent=59 // pred_check
        %p784 = pneg %p216
      $region62: #{group_forward.3} parent=59 // pred_check_branch
        %786 = sbr.rel (%p784) target = $region64
      $region63: #{group_forward.3} parent=59 // pred_region
        %p787 = scmp.lt.s32.totalorder %s20, 1
        %s788 = scalar_select %p787, %s20, 1
        %s789 = smul.addr %s788, 3
        %s790 = smul.addr %s789, 8
        %s791 = scalar_lea.vmem %s8, %s790
      $region64: #{group_forward.3} parent=59 // pred_fallthru
        _
    $region60: #{group_forward.3} parent=5 // pred_fallthru
      _
  $region6: #{group_forward.3} parent=0 // loop_footer
    %s18 = sadd.s32 1, %s14
  $region7: #{group_forward.3} parent=0 // loop_footer_branch
    %13 = sbr.rel target = $region3
  $region8: #{group_forward.3} parent=0 // loop_exit
    _

</llo_original>
